<compile_context>
chip_gen: v5e
topology: v5e:2x2
jax: 0.10.0
libtpu: 0.0.40
codegen_flags: <defaults>
</compile_context>

<pallas_src>
import functools

import jax
import jax.numpy as jnp
from jax import lax
from jax.experimental import pallas as pl
from jax.experimental.pallas import tpu as pltpu


def dkt_kernel(qe_ref, a_ref, nq_ref,
               w_ih_ref, w_hh_ref, b_g_ref,
               w_hid_ref, b_hid_ref, w_pred_ref, b_pred_ref,
               out_ref,
               gates_scr, stu_scr, h_scr, c_scr):
    t_idx = pl.program_id(1)
    Tt, Bb, H4 = gates_scr.shape
    H = H4 // 4
    E = qe_ref.shape[-1]
    rows = Tt * Bb
    fuse = E < 128          # small feature dim: one K=2E matmul beats two K=E matmuls

    # ---- persistent (h, c) carry: zero only at the first time block ----------
    @pl.when(t_idx == 0)
    def _():
        h_scr[...] = jnp.zeros_like(h_scr)
        c_scr[...] = jnp.zeros_like(c_scr)

    # ---- Fusion_Module + hoisted LSTM input projection ------------------------
    # x = [qe*a, qe*(1-a)]; gates_x = x @ W_ih^T + b as one big MXU matmul per
    # time block (inputs already arrive as 2-D rows: no in-kernel reshape).
    qe = qe_ref[...]                         # (rows, E)  bf16, rows ordered (t, b)
    ans = a_ref[...]                         # (rows, 1)  bf16 in {0, 1}
    qa = qe * ans                            # answered-correct half (exact)
    qna = qe - qa                            # answered-wrong half == qe*(1-a)
    if fuse:
        x2 = jnp.concatenate([qa, qna], axis=-1)                   # (rows, 2E)
        gx = jnp.dot(x2, w_ih_ref[...], preferred_element_type=jnp.float32)
    else:
        gx = (jnp.dot(qa, w_ih_ref[0:E, :], preferred_element_type=jnp.float32)
              + jnp.dot(qna, w_ih_ref[E:2 * E, :],
                        preferred_element_type=jnp.float32))
    gx = gx + b_g_ref[...]                                         # (rows, 4H) f32
    gates_scr[...] = gx.reshape(Tt, Bb, 4 * H).astype(gates_scr.dtype)

    # ---- LSTM recurrence (PyTorch gate order: i, f, g, o) ---------------------
    w_hh = w_hh_ref[...]                     # (H, 4H) bf16
    # Unroll bounded by live-gate vreg pressure (keep <= ~64 KiB of f32 gates live).
    unroll = max(1, min(Tt, 8, (64 * 1024) // max(1, Bb * 4 * H * 4)))

    def step(t, carry):
        h, c = carry                         # f32 (Bb, H)
        g = gates_scr[t].astype(jnp.float32) + jnp.dot(
            h.astype(jnp.bfloat16), w_hh, preferred_element_type=jnp.float32)
        # NOTE: for H < 128 the gate reads are lane sub-slices; padding each gate
        # to 128 lanes would 4x the recurrent matmul width and gates VMEM, so we
        # keep the slices here.
        i_g = jax.nn.sigmoid(g[:, 0:H])
        f_g = jax.nn.sigmoid(g[:, H:2 * H])
        g_g = jnp.tanh(g[:, 2 * H:3 * H])
        o_g = jax.nn.sigmoid(g[:, 3 * H:4 * H])
        c_new = f_g * c + i_g * g_g
        h_new = o_g * jnp.tanh(c_new)
        stu_scr[t] = h_new.astype(stu_scr.dtype)
        return (h_new, c_new)

    h_fin, c_fin = lax.fori_loop(0, Tt, step, (h_scr[...], c_scr[...]),
                                 unroll=unroll)
    h_scr[...] = h_fin
    c_scr[...] = c_fin

    # ---- Head: Linear(cat(h, next_q)) -> ReLU -> Linear -> sigmoid ------------
    stu2 = stu_scr[...].reshape(rows, H)                           # bf16
    nq2 = nq_ref[...]                                              # (rows, E) bf16
    if fuse:
        y2 = jnp.concatenate([stu2, nq2], axis=-1)                 # (rows, 2E)
        hdn = jnp.dot(y2, w_hid_ref[...], preferred_element_type=jnp.float32)
    else:
        hdn = (jnp.dot(stu2, w_hid_ref[0:H, :], preferred_element_type=jnp.float32)
               + jnp.dot(nq2, w_hid_ref[H:2 * H, :],
                         preferred_element_type=jnp.float32))
    hdn = jnp.maximum(hdn + b_hid_ref[...], 0.0)                   # (rows, E) f32
    logits = (jnp.sum((hdn * w_pred_ref[...]).reshape(Tt, Bb, E), axis=-1)
              + b_pred_ref[...])                                   # (Tt, Bb)
    # TODO(synk): nn.Dropout(p=0.2) is identity here (eval-mode semantics).
    out_ref[...] = jax.nn.sigmoid(logits)                          # lane-dense (Tt, Bb)


def _tpu_info():
    """Returns (is_megacore_v7x, physical_vmem_bytes) with safe fallbacks."""
    vmem = 64 * 1024 * 1024
    try:
        v = int(pltpu.get_tpu_info().vmem_capacity_bytes)
        if v > 0:
            vmem = v
    except Exception:
        pass
    is_v7 = False
    try:
        kind = jax.devices()[0].device_kind.lower()
        is_v7 = ("v7" in kind) or ("7x" in kind)
    except Exception:
        pass
    return is_v7, vmem


def _vmem_tile_bytes(t_tile, b_blk, E):
    """Rough per-grid-step VMEM footprint (double-buffered data + scratch + weights)."""
    H = E
    rows = t_tile * b_blk
    bf16 = 2
    data = 2 * (2 * rows * E * bf16)          # qe + nq tiles, double-buffered
    data += 2 * rows * 1 * bf16               # answer gate tile, double-buffered
    data += 2 * t_tile * b_blk * 4            # output tile, double-buffered
    scratch = rows * 4 * H * bf16             # hoisted gates (bf16)
    scratch += rows * H * bf16                # hidden states (bf16)
    scratch += 2 * b_blk * H * 4              # (h, c) carry
    weights = (2 * E * 4 * H + H * 4 * H + 2 * E * E) * bf16   # single-buffered
    weights += (4 * H + 2 * E + 1) * 4
    return data + scratch + weights + (2 << 20)   # + compiler-internal headroom


def _pick_t_tile(T, b_blk, E, budget_bytes, cap=256):
    """Largest divisor of T that is sublane-aligned and fits the VMEM budget."""
    legal = [tt for tt in range(1, T + 1)
             if T % tt == 0 and (tt == T or tt % 8 == 0)]
    candidates = [tt for tt in legal if tt <= cap] or [min(legal)]
    fitting = [tt for tt in candidates
               if _vmem_tile_bytes(tt, b_blk, E) <= budget_bytes]
    return max(fitting) if fitting else min(candidates)


def dkt_forward(q, a, next_q, params, *, t_tile=None):
    """q, a, next_q: int32 [B, T].  Returns float32 [B, T] (matches y.squeeze(-1))."""
    emb_bf16 = params["emb"].astype(jnp.bfloat16)                    # [Q, E]
    q_emb_t = jnp.transpose(emb_bf16[q], (1, 0, 2))                  # [T, B, E]
    nq_emb_t = jnp.transpose(emb_bf16[next_q], (1, 0, 2))            # [T, B, E]
    a_t = jnp.transpose(a, (1, 0)).astype(jnp.bfloat16)[..., None]   # [T, B, 1]

    T, B, E = q_emb_t.shape
    H = E

    is_v7, vmem_phys = _tpu_info()
    # Megacore batch split only on v7x and only when the halves stay fully
    # bf16-packed; single-TC v5e/v6e keep the whole batch in one block.
    b_blk = B // 2 if (is_v7 and B % 32 == 0) else B
    nb = B // b_blk

    # Generation-aware VMEM policy: big chips (128 MiB v5e/v6e) get ~96 MiB,
    # v7x (64 MiB physical) stays at 48 MiB; the tile is sized from that budget.
    big_vmem = vmem_phys >= 100 * 1024 * 1024
    vmem_limit = (96 if big_vmem else 48) * 1024 * 1024
    if t_tile is None:
        t_tile = _pick_t_tile(T, b_blk, E, budget_bytes=int(vmem_limit * 0.75))
    assert T % t_tile == 0
    assert t_tile == T or t_tile % 8 == 0, "time tile must be sublane-aligned"
    nt = T // t_tile
    rows_blk = t_tile * b_blk

    # Batch-block-major, time-flattened layouts: [nb, T*b_blk, feat]
    def to_blocks(x_tbf):                     # [T, B, f] -> [nb, T*b_blk, f]
        f = x_tbf.shape[-1]
        return (x_tbf.reshape(T, nb, b_blk, f)
                .transpose(1, 0, 2, 3)
                .reshape(nb, T * b_blk, f))

    qe_in = to_blocks(q_emb_t)
    nq_in = to_blocks(nq_emb_t)
    a_in = to_blocks(a_t)

    # Weight prep: transpose to [in, out]; the kernel fuses (E < 128) or splits
    # (E >= 128) the concat halves statically, so no concatenate of big
    # activations is ever materialized in HBM.
    w_ih_T = params["w_ih"].T.astype(jnp.bfloat16)                   # [2E, 4H]
    w_hh_T = params["w_hh"].T.astype(jnp.bfloat16)                   # [H, 4H]
    b_g = (params["b_ih"] + params["b_hh"])[None, :].astype(jnp.float32)   # [1, 4H]
    w_hid_T = params["w_hidden"].T.astype(jnp.bfloat16)              # [2E, E]
    b_hid = params["b_hidden"][None, :].astype(jnp.float32)          # [1, E]
    w_pred = params["w_predict"].astype(jnp.float32)                 # [1, E]
    b_pred = params["b_predict"].reshape(1, 1).astype(jnp.float32)   # [1, 1]

    def data_spec(feat):
        return pl.BlockSpec((None, rows_blk, feat), lambda b, t: (b, t, 0))

    def const(shape):
        # Constant weights: block index never changes -> single-buffer to save VMEM.
        try:
            return pl.BlockSpec(shape, lambda b, t: (0,) * len(shape),
                                pipeline_mode=pl.Buffered(1))
        except Exception:
            return pl.BlockSpec(shape, lambda b, t: (0,) * len(shape))

    y_blocks = pl.pallas_call(
        dkt_kernel,
        out_shape=jax.ShapeDtypeStruct((nb, T, b_blk), jnp.float32),
        grid=(nb, nt),
        in_specs=[
            data_spec(E),                     # q_emb rows
            data_spec(1),                     # answer gate
            data_spec(E),                     # next_q emb rows
            const((2 * E, 4 * H)),            # w_ih (fused halves)
            const((H, 4 * H)),                # w_hh
            const((1, 4 * H)),                # b_gates
            const((2 * E, E)),                # w_hidden (fused halves)
            const((1, E)),                    # b_hidden
            const((1, E)),                    # w_predict
            const((1, 1)),                    # b_predict
        ],
        out_specs=pl.BlockSpec((None, t_tile, b_blk), lambda b, t: (b, t, 0)),
        scratch_shapes=[
            pltpu.VMEM((t_tile, b_blk, 4 * H), jnp.bfloat16),   # hoisted gates_x
            pltpu.VMEM((t_tile, b_blk, H), jnp.bfloat16),       # hidden states
            pltpu.VMEM((b_blk, H), jnp.float32),                # h carry
            pltpu.VMEM((b_blk, H), jnp.float32),                # c carry
        ],
        compiler_params=pltpu.CompilerParams(
            dimension_semantics=("parallel", "arbitrary"),
            vmem_limit_bytes=vmem_limit,
        ),
    )(qe_in, a_in, nq_in, w_ih_T, w_hh_T, b_g, w_hid_T, b_hid, w_pred, b_pred)

    y_tb = jnp.transpose(y_blocks, (1, 0, 2)).reshape(T, B)          # [T, B]
    return jnp.transpose(y_tb, (1, 0))                               # [B, T]


def dkt_reference(q, a, next_q, params):
    """Pure-JAX f32 reference of the PyTorch forward (eval mode)."""
    emb = params["emb"]
    q_emb = emb[q].astype(jnp.float32)                 # [B, T, E]
    nq_emb = emb[next_q].astype(jnp.float32)
    B, T, E = q_emb.shape
    H = E
    a_f = a.astype(jnp.float32)[..., None]
    x = jnp.concatenate([q_emb * a_f, q_emb * (1.0 - a_f)], axis=-1)  # [B, T, 2E]

    w_ih, w_hh = params["w_ih"], params["w_hh"]
    b = params["b_ih"] + params["b_hh"]
    hp = jax.lax.Precision.HIGHEST

    def cell(carry, x_t):
        h, c = carry
        gates = (jnp.dot(x_t, w_ih.T, precision=hp)
                 + jnp.dot(h, w_hh.T, precision=hp) + b)
        i_g = jax.nn.sigmoid(gates[:, 0:H])
        f_g = jax.nn.sigmoid(gates[:, H:2 * H])
        g_g = jnp.tanh(gates[:, 2 * H:3 * H])
        o_g = jax.nn.sigmoid(gates[:, 3 * H:4 * H])
        c_new = f_g * c + i_g * g_g
        h_new = o_g * jnp.tanh(c_new)
        return (h_new, c_new), h_new

    h0 = jnp.zeros((B, H), jnp.float32)
    c0 = jnp.zeros((B, H), jnp.float32)
    _, hs = lax.scan(cell, (h0, c0), jnp.transpose(x, (1, 0, 2)))
    stu = jnp.transpose(hs, (1, 0, 2))                  # [B, T, H]

    y = jnp.concatenate([stu, nq_emb], axis=-1)         # [B, T, 2E]
    y = jnp.maximum(jnp.dot(y, params["w_hidden"].T, precision=hp)
                    + params["b_hidden"], 0.0)
    y = jnp.dot(y, params["w_predict"].T, precision=hp) + params["b_predict"]
    return jax.nn.sigmoid(y)[..., 0]                    # [B, T]


def init_params(key, question_num, embed_dim):
    E, H = embed_dim, embed_dim
    ks = jax.random.split(key, 10)
    k_lstm = 1.0 / jnp.sqrt(H)
    k_hid = 1.0 / jnp.sqrt(2 * E)
    k_pred = 1.0 / jnp.sqrt(E)
    u = lambda k, shape, s: jax.random.uniform(k, shape, jnp.float32, -s, s)
    return {
        "emb": jax.random.normal(ks[0], (question_num, E), jnp.float32),
        "w_ih": u(ks[1], (4 * H, 2 * E), k_lstm),
        "w_hh": u(ks[2], (4 * H, H), k_lstm),
        "b_ih": u(ks[3], (4 * H,), k_lstm),
        "b_hh": u(ks[4], (4 * H,), k_lstm),
        "w_hidden": u(ks[5], (E, 2 * E), k_hid),
        "b_hidden": u(ks[6], (E,), k_hid),
        "w_predict": u(ks[7], (1, E), k_pred),
        "b_predict": u(ks[8], (1,), k_pred),
    }


if __name__ == "__main__":
    B, T, E, Q = 2, 16, 32, 50   # batch, seq, embed_dim(=hidden), question_num

    key = jax.random.PRNGKey(0)
    kp, kq, ka, kn = jax.random.split(key, 4)
    params = init_params(kp, Q, E)

    q = jax.random.randint(kq, (B, T), 0, Q, dtype=jnp.int32)
    a = jax.random.randint(ka, (B, T), 0, 2, dtype=jnp.int32)
    next_q = jax.random.randint(kn, (B, T), 0, Q, dtype=jnp.int32)

    # t_tile=8 -> 2 time blocks: exercises the persistent (h, c) carry and the
    # pl.when init while keeping every block sublane/lane aligned.
    fwd = jax.jit(functools.partial(dkt_forward, params=params, t_tile=8))
    y = jax.block_until_ready(fwd(q, a, next_q))

    y_ref = jax.block_until_ready(dkt_reference(q, a, next_q, params))
    assert y.shape == (B, T)
    # bf16 matmul operands / bf16 gates scratch (f32 accumulate & gate math)
    # vs f32-HIGHEST reference.
    assert jnp.allclose(y, y_ref, atol=4e-2, rtol=4e-2), (y, y_ref)

    print("KERNEL_OK")
</pallas_src>

<mosaic_0001>
module attributes {stable_mosaic.version = 11 : i64} {
  func.func @dkt_kernel(%arg0: i32, %arg1: i32, %arg2: memref<1x16x32xbf16, #tpu.memory_space<vmem>>, %arg3: memref<1x16x1xbf16, #tpu.memory_space<vmem>>, %arg4: memref<1x16x32xbf16, #tpu.memory_space<vmem>>, %arg5: memref<64x128xbf16, #tpu.memory_space<vmem>>, %arg6: memref<32x128xbf16, #tpu.memory_space<vmem>>, %arg7: memref<1x128xf32, #tpu.memory_space<vmem>>, %arg8: memref<64x32xbf16, #tpu.memory_space<vmem>>, %arg9: memref<1x32xf32, #tpu.memory_space<vmem>>, %arg10: memref<1x32xf32, #tpu.memory_space<vmem>>, %arg11: memref<1x1xf32, #tpu.memory_space<vmem>>, %arg12: memref<1x8x2xf32, #tpu.memory_space<vmem>>, %arg13: memref<8x2x128xbf16, #tpu.memory_space<vmem>>, %arg14: memref<8x2x32xbf16, #tpu.memory_space<vmem>>, %arg15: memref<2x32xf32, #tpu.memory_space<vmem>>, %arg16: memref<2x32xf32, #tpu.memory_space<vmem>>) attributes {dimension_semantics = [#tpu.dimension_semantics<parallel>, #tpu.dimension_semantics<arbitrary>], iteration_bounds = array<i64: 1, 2>, scalar_prefetch = 0 : i64, scratch_operands = 4 : i64, tpu.core_type = #tpu.core_type<tc>, window_params = [{transform_indices = @transform_0, window_bounds = array<i64: 1, 16, 32>}, {transform_indices = @transform_1, window_bounds = array<i64: 1, 16, 1>}, {transform_indices = @transform_2, window_bounds = array<i64: 1, 16, 32>}, {pipeline_mode = #tpu.pipeline_mode<synchronous>, transform_indices = @transform_3, window_bounds = array<i64: 64, 128>}, {pipeline_mode = #tpu.pipeline_mode<synchronous>, transform_indices = @transform_4, window_bounds = array<i64: 32, 128>}, {pipeline_mode = #tpu.pipeline_mode<synchronous>, transform_indices = @transform_5, window_bounds = array<i64: 1, 128>}, {pipeline_mode = #tpu.pipeline_mode<synchronous>, transform_indices = @transform_6, window_bounds = array<i64: 64, 32>}, {pipeline_mode = #tpu.pipeline_mode<synchronous>, transform_indices = @transform_7, window_bounds = array<i64: 1, 32>}, {pipeline_mode = #tpu.pipeline_mode<synchronous>, transform_indices = @transform_8, window_bounds = array<i64: 1, 32>}, {pipeline_mode = #tpu.pipeline_mode<synchronous>, transform_indices = @transform_9, window_bounds = array<i64: 1, 1>}, {transform_indices = @transform_10, window_bounds = array<i64: 1, 8, 2>}]} {
    %c0_i32 = arith.constant 0 : i32
    %0 = arith.cmpi eq, %arg1, %c0_i32 : i32
    %1 = arith.extui %0 : i1 to i32
    %c0_i32_0 = arith.constant 0 : i32
    %2 = arith.cmpi ne, %1, %c0_i32_0 : i32
    scf.if %2 {
      %cst_109 = arith.constant 0.000000e+00 : f32
      %348 = vector.broadcast %cst_109 : f32 to vector<2x32xf32>
      %c0_110 = arith.constant 0 : index
      %c0_111 = arith.constant 0 : index
      %349 = vector.load %arg15[%c0_110, %c0_111] : memref<2x32xf32, #tpu.memory_space<vmem>>, vector<2x32xf32>
      tpu.vector_store %arg15[%c0_110, %c0_111], %348 {strides = array<i32>} : memref<2x32xf32, #tpu.memory_space<vmem>>, vector<2x32xf32>,
      %cst_112 = arith.constant 0.000000e+00 : f32
      %350 = vector.broadcast %cst_112 : f32 to vector<2x32xf32>
      %c0_113 = arith.constant 0 : index
      %c0_114 = arith.constant 0 : index
      %351 = vector.load %arg16[%c0_113, %c0_114] : memref<2x32xf32, #tpu.memory_space<vmem>>, vector<2x32xf32>
      tpu.vector_store %arg16[%c0_113, %c0_114], %350 {strides = array<i32>} : memref<2x32xf32, #tpu.memory_space<vmem>>, vector<2x32xf32>,
    } else {
    }
    %c0 = arith.constant 0 : index
    %c0_1 = arith.constant 0 : index
    %c0_2 = arith.constant 0 : index
    %3 = vector.load %arg2[%c0, %c0_1, %c0_2] : memref<1x16x32xbf16, #tpu.memory_space<vmem>>, vector<1x16x32xbf16>
    %4 = vector.shape_cast %3 : vector<1x16x32xbf16> to vector<16x32xbf16>
    %c0_3 = arith.constant 0 : index
    %c0_4 = arith.constant 0 : index
    %c0_5 = arith.constant 0 : index
    %5 = vector.load %arg3[%c0_3, %c0_4, %c0_5] : memref<1x16x1xbf16, #tpu.memory_space<vmem>>, vector<1x16x1xbf16>
    %6 = vector.shape_cast %5 : vector<1x16x1xbf16> to vector<16x1xbf16>
    %7 = vector.broadcast %6 : vector<16x1xbf16> to vector<16x32xbf16>
    %8 = arith.mulf %4, %7 : vector<16x32xbf16>
    %9 = arith.subf %4, %8 : vector<16x32xbf16>
    %10 = tpu.concatenate %8, %9 in 1 : vector<16x32xbf16>, vector<16x32xbf16> -> vector<16x64xbf16>
    %c0_6 = arith.constant 0 : index
    %c0_7 = arith.constant 0 : index
    %11 = vector.load %arg5[%c0_6, %c0_7] : memref<64x128xbf16, #tpu.memory_space<vmem>>, vector<64x128xbf16>
    %cst = arith.constant dense<0.000000e+00> : vector<16x128xf32>
    %12 = tpu.matmul %10, %11, %cst {dimension_numbers = #tpu.dot_dimension_numbers<[1], [0], [0], [1], [0, 0, 1, 1], [], []>} : vector<16x64xbf16>, vector<64x128xbf16>, vector<16x128xf32> -> vector<16x128xf32>
    %c0_8 = arith.constant 0 : index
    %c0_9 = arith.constant 0 : index
    %13 = vector.load %arg7[%c0_8, %c0_9] : memref<1x128xf32, #tpu.memory_space<vmem>>, vector<1x128xf32>
    %14 = vector.broadcast %13 : vector<1x128xf32> to vector<16x128xf32>
    %15 = arith.addf %12, %14 : vector<16x128xf32>
    %16 = vector.shape_cast %15 : vector<16x128xf32> to vector<8x2x128xf32>
    %17 = arith.truncf %16 : vector<8x2x128xf32> to vector<8x2x128xbf16>
    %c0_10 = arith.constant 0 : index
    %c0_11 = arith.constant 0 : index
    %c0_12 = arith.constant 0 : index
    %18 = vector.load %arg13[%c0_10, %c0_11, %c0_12] : memref<8x2x128xbf16, #tpu.memory_space<vmem>>, vector<8x2x128xbf16>
    tpu.vector_store %arg13[%c0_10, %c0_11, %c0_12], %17 {strides = array<i32>} : memref<8x2x128xbf16, #tpu.memory_space<vmem>>, vector<8x2x128xbf16>,
    %c0_13 = arith.constant 0 : index
    %c0_14 = arith.constant 0 : index
    %19 = vector.load %arg6[%c0_13, %c0_14] : memref<32x128xbf16, #tpu.memory_space<vmem>>, vector<32x128xbf16>
    %c0_15 = arith.constant 0 : index
    %c0_16 = arith.constant 0 : index
    %20 = vector.load %arg15[%c0_15, %c0_16] : memref<2x32xf32, #tpu.memory_space<vmem>>, vector<2x32xf32>
    %c0_17 = arith.constant 0 : index
    %c0_18 = arith.constant 0 : index
    %21 = vector.load %arg16[%c0_17, %c0_18] : memref<2x32xf32, #tpu.memory_space<vmem>>, vector<2x32xf32>
    %c0_i32_19 = arith.constant 0 : i32
    %22 = arith.index_cast %c0_i32_19 : i32 to index
    %c0_20 = arith.constant 0 : index
    %c0_21 = arith.constant 0 : index
    %23 = vector.load %arg13[%22, %c0_20, %c0_21] : memref<8x2x128xbf16, #tpu.memory_space<vmem>>, vector<1x2x128xbf16>
    %24 = vector.shape_cast %23 : vector<1x2x128xbf16> to vector<2x128xbf16>
    %25 = arith.extf %24 : vector<2x128xbf16> to vector<2x128xf32>
    %26 = arith.truncf %20 : vector<2x32xf32> to vector<2x32xbf16>
    %cst_22 = arith.constant dense<0.000000e+00> : vector<2x128xf32>
    %27 = tpu.matmul %26, %19, %cst_22 {dimension_numbers = #tpu.dot_dimension_numbers<[1], [0], [0], [1], [0, 0, 1, 1], [], []>} : vector<2x32xbf16>, vector<32x128xbf16>, vector<2x128xf32> -> vector<2x128xf32>
    %28 = arith.addf %25, %27 : vector<2x128xf32>
    %29 = vector.extract_strided_slice %28 {offsets = [0, 0], sizes = [2, 32], strides = [1, 1]} : vector<2x128xf32> to vector<2x32xf32>
    %30 = arith.negf %29 : vector<2x32xf32>
    %31 = math.exp %30 : vector<2x32xf32>
    %cst_23 = arith.constant 1.000000e+00 : f32
    %32 = vector.broadcast %cst_23 : f32 to vector<2x32xf32>
    %33 = arith.addf %32, %31 : vector<2x32xf32>
    %34 = arith.divf %32, %33 : vector<2x32xf32>
    %35 = vector.extract_strided_slice %28 {offsets = [0, 32], sizes = [2, 32], strides = [1, 1]} : vector<2x128xf32> to vector<2x32xf32>
    %36 = arith.negf %35 : vector<2x32xf32>
    %37 = math.exp %36 : vector<2x32xf32>
    %cst_24 = arith.constant 1.000000e+00 : f32
    %38 = vector.broadcast %cst_24 : f32 to vector<2x32xf32>
    %39 = arith.addf %38, %37 : vector<2x32xf32>
    %40 = arith.divf %38, %39 : vector<2x32xf32>
    %41 = vector.extract_strided_slice %28 {offsets = [0, 64], sizes = [2, 32], strides = [1, 1]} : vector<2x128xf32> to vector<2x32xf32>
    %42 = math.tanh %41 : vector<2x32xf32>
    %43 = vector.extract_strided_slice %28 {offsets = [0, 96], sizes = [2, 32], strides = [1, 1]} : vector<2x128xf32> to vector<2x32xf32>
    %44 = arith.negf %43 : vector<2x32xf32>
    %45 = math.exp %44 : vector<2x32xf32>
    %cst_25 = arith.constant 1.000000e+00 : f32
    %46 = vector.broadcast %cst_25 : f32 to vector<2x32xf32>
    %47 = arith.addf %46, %45 : vector<2x32xf32>
    %48 = arith.divf %46, %47 : vector<2x32xf32>
    %49 = arith.mulf %40, %21 : vector<2x32xf32>
    %50 = arith.mulf %34, %42 : vector<2x32xf32>
    %51 = arith.addf %49, %50 : vector<2x32xf32>
    %52 = math.tanh %51 : vector<2x32xf32>
    %53 = arith.mulf %48, %52 : vector<2x32xf32>
    %54 = arith.truncf %53 : vector<2x32xf32> to vector<2x32xbf16>
    %55 = arith.index_cast %c0_i32_19 : i32 to index
    %c0_26 = arith.constant 0 : index
    %c0_27 = arith.constant 0 : index
    %56 = vector.load %arg14[%55, %c0_26, %c0_27] : memref<8x2x32xbf16, #tpu.memory_space<vmem>>, vector<1x2x32xbf16>
    %57 = vector.shape_cast %56 : vector<1x2x32xbf16> to vector<2x32xbf16>
    %58 = vector.shape_cast %54 : vector<2x32xbf16> to vector<1x2x32xbf16>
    tpu.vector_store %arg14[%55, %c0_26, %c0_27], %58 {strides = array<i32>} : memref<8x2x32xbf16, #tpu.memory_space<vmem>>, vector<1x2x32xbf16>,
    %c1_i32 = arith.constant 1 : i32
    %59 = arith.index_cast %c1_i32 : i32 to index
    %c0_28 = arith.constant 0 : index
    %c0_29 = arith.constant 0 : index
    %60 = vector.load %arg13[%59, %c0_28, %c0_29] : memref<8x2x128xbf16, #tpu.memory_space<vmem>>, vector<1x2x128xbf16>
    %61 = vector.shape_cast %60 : vector<1x2x128xbf16> to vector<2x128xbf16>
    %62 = arith.extf %61 : vector<2x128xbf16> to vector<2x128xf32>
    %63 = arith.truncf %53 : vector<2x32xf32> to vector<2x32xbf16>
    %cst_30 = arith.constant dense<0.000000e+00> : vector<2x128xf32>
    %64 = tpu.matmul %63, %19, %cst_30 {dimension_numbers = #tpu.dot_dimension_numbers<[1], [0], [0], [1], [0, 0, 1, 1], [], []>} : vector<2x32xbf16>, vector<32x128xbf16>, vector<2x128xf32> -> vector<2x128xf32>
    %65 = arith.addf %62, %64 : vector<2x128xf32>
    %66 = vector.extract_strided_slice %65 {offsets = [0, 0], sizes = [2, 32], strides = [1, 1]} : vector<2x128xf32> to vector<2x32xf32>
    %67 = arith.negf %66 : vector<2x32xf32>
    %68 = math.exp %67 : vector<2x32xf32>
    %cst_31 = arith.constant 1.000000e+00 : f32
    %69 = vector.broadcast %cst_31 : f32 to vector<2x32xf32>
    %70 = arith.addf %69, %68 : vector<2x32xf32>
    %71 = arith.divf %69, %70 : vector<2x32xf32>
    %72 = vector.extract_strided_slice %65 {offsets = [0, 32], sizes = [2, 32], strides = [1, 1]} : vector<2x128xf32> to vector<2x32xf32>
    %73 = arith.negf %72 : vector<2x32xf32>
    %74 = math.exp %73 : vector<2x32xf32>
    %cst_32 = arith.constant 1.000000e+00 : f32
    %75 = vector.broadcast %cst_32 : f32 to vector<2x32xf32>
    %76 = arith.addf %75, %74 : vector<2x32xf32>
    %77 = arith.divf %75, %76 : vector<2x32xf32>
    %78 = vector.extract_strided_slice %65 {offsets = [0, 64], sizes = [2, 32], strides = [1, 1]} : vector<2x128xf32> to vector<2x32xf32>
    %79 = math.tanh %78 : vector<2x32xf32>
    %80 = vector.extract_strided_slice %65 {offsets = [0, 96], sizes = [2, 32], strides = [1, 1]} : vector<2x128xf32> to vector<2x32xf32>
    %81 = arith.negf %80 : vector<2x32xf32>
    %82 = math.exp %81 : vector<2x32xf32>
    %cst_33 = arith.constant 1.000000e+00 : f32
    %83 = vector.broadcast %cst_33 : f32 to vector<2x32xf32>
    %84 = arith.addf %83, %82 : vector<2x32xf32>
    %85 = arith.divf %83, %84 : vector<2x32xf32>
    %86 = arith.mulf %77, %51 : vector<2x32xf32>
    %87 = arith.mulf %71, %79 : vector<2x32xf32>
    %88 = arith.addf %86, %87 : vector<2x32xf32>
    %89 = math.tanh %88 : vector<2x32xf32>
    %90 = arith.mulf %85, %89 : vector<2x32xf32>
    %91 = arith.truncf %90 : vector<2x32xf32> to vector<2x32xbf16>
    %92 = arith.index_cast %c1_i32 : i32 to index
    %c0_34 = arith.constant 0 : index
    %c0_35 = arith.constant 0 : index
    %93 = vector.load %arg14[%92, %c0_34, %c0_35] : memref<8x2x32xbf16, #tpu.memory_space<vmem>>, vector<1x2x32xbf16>
    %94 = vector.shape_cast %93 : vector<1x2x32xbf16> to vector<2x32xbf16>
    %95 = vector.shape_cast %91 : vector<2x32xbf16> to vector<1x2x32xbf16>
    tpu.vector_store %arg14[%92, %c0_34, %c0_35], %95 {strides = array<i32>} : memref<8x2x32xbf16, #tpu.memory_space<vmem>>, vector<1x2x32xbf16>,
    %c2_i32 = arith.constant 2 : i32
    %96 = arith.index_cast %c2_i32 : i32 to index
    %c0_36 = arith.constant 0 : index
    %c0_37 = arith.constant 0 : index
    %97 = vector.load %arg13[%96, %c0_36, %c0_37] : memref<8x2x128xbf16, #tpu.memory_space<vmem>>, vector<1x2x128xbf16>
    %98 = vector.shape_cast %97 : vector<1x2x128xbf16> to vector<2x128xbf16>
    %99 = arith.extf %98 : vector<2x128xbf16> to vector<2x128xf32>
    %100 = arith.truncf %90 : vector<2x32xf32> to vector<2x32xbf16>
    %cst_38 = arith.constant dense<0.000000e+00> : vector<2x128xf32>
    %101 = tpu.matmul %100, %19, %cst_38 {dimension_numbers = #tpu.dot_dimension_numbers<[1], [0], [0], [1], [0, 0, 1, 1], [], []>} : vector<2x32xbf16>, vector<32x128xbf16>, vector<2x128xf32> -> vector<2x128xf32>
    %102 = arith.addf %99, %101 : vector<2x128xf32>
    %103 = vector.extract_strided_slice %102 {offsets = [0, 0], sizes = [2, 32], strides = [1, 1]} : vector<2x128xf32> to vector<2x32xf32>
    %104 = arith.negf %103 : vector<2x32xf32>
    %105 = math.exp %104 : vector<2x32xf32>
    %cst_39 = arith.constant 1.000000e+00 : f32
    %106 = vector.broadcast %cst_39 : f32 to vector<2x32xf32>
    %107 = arith.addf %106, %105 : vector<2x32xf32>
    %108 = arith.divf %106, %107 : vector<2x32xf32>
    %109 = vector.extract_strided_slice %102 {offsets = [0, 32], sizes = [2, 32], strides = [1, 1]} : vector<2x128xf32> to vector<2x32xf32>
    %110 = arith.negf %109 : vector<2x32xf32>
    %111 = math.exp %110 : vector<2x32xf32>
    %cst_40 = arith.constant 1.000000e+00 : f32
    %112 = vector.broadcast %cst_40 : f32 to vector<2x32xf32>
    %113 = arith.addf %112, %111 : vector<2x32xf32>
    %114 = arith.divf %112, %113 : vector<2x32xf32>
    %115 = vector.extract_strided_slice %102 {offsets = [0, 64], sizes = [2, 32], strides = [1, 1]} : vector<2x128xf32> to vector<2x32xf32>
    %116 = math.tanh %115 : vector<2x32xf32>
    %117 = vector.extract_strided_slice %102 {offsets = [0, 96], sizes = [2, 32], strides = [1, 1]} : vector<2x128xf32> to vector<2x32xf32>
    %118 = arith.negf %117 : vector<2x32xf32>
    %119 = math.exp %118 : vector<2x32xf32>
    %cst_41 = arith.constant 1.000000e+00 : f32
    %120 = vector.broadcast %cst_41 : f32 to vector<2x32xf32>
    %121 = arith.addf %120, %119 : vector<2x32xf32>
    %122 = arith.divf %120, %121 : vector<2x32xf32>
    %123 = arith.mulf %114, %88 : vector<2x32xf32>
    %124 = arith.mulf %108, %116 : vector<2x32xf32>
    %125 = arith.addf %123, %124 : vector<2x32xf32>
    %126 = math.tanh %125 : vector<2x32xf32>
    %127 = arith.mulf %122, %126 : vector<2x32xf32>
    %128 = arith.truncf %127 : vector<2x32xf32> to vector<2x32xbf16>
    %129 = arith.index_cast %c2_i32 : i32 to index
    %c0_42 = arith.constant 0 : index
    %c0_43 = arith.constant 0 : index
    %130 = vector.load %arg14[%129, %c0_42, %c0_43] : memref<8x2x32xbf16, #tpu.memory_space<vmem>>, vector<1x2x32xbf16>
    %131 = vector.shape_cast %130 : vector<1x2x32xbf16> to vector<2x32xbf16>
    %132 = vector.shape_cast %128 : vector<2x32xbf16> to vector<1x2x32xbf16>
    tpu.vector_store %arg14[%129, %c0_42, %c0_43], %132 {strides = array<i32>} : memref<8x2x32xbf16, #tpu.memory_space<vmem>>, vector<1x2x32xbf16>,
    %c3_i32 = arith.constant 3 : i32
    %133 = arith.index_cast %c3_i32 : i32 to index
    %c0_44 = arith.constant 0 : index
    %c0_45 = arith.constant 0 : index
    %134 = vector.load %arg13[%133, %c0_44, %c0_45] : memref<8x2x128xbf16, #tpu.memory_space<vmem>>, vector<1x2x128xbf16>
    %135 = vector.shape_cast %134 : vector<1x2x128xbf16> to vector<2x128xbf16>
    %136 = arith.extf %135 : vector<2x128xbf16> to vector<2x128xf32>
    %137 = arith.truncf %127 : vector<2x32xf32> to vector<2x32xbf16>
    %cst_46 = arith.constant dense<0.000000e+00> : vector<2x128xf32>
    %138 = tpu.matmul %137, %19, %cst_46 {dimension_numbers = #tpu.dot_dimension_numbers<[1], [0], [0], [1], [0, 0, 1, 1], [], []>} : vector<2x32xbf16>, vector<32x128xbf16>, vector<2x128xf32> -> vector<2x128xf32>
    %139 = arith.addf %136, %138 : vector<2x128xf32>
    %140 = vector.extract_strided_slice %139 {offsets = [0, 0], sizes = [2, 32], strides = [1, 1]} : vector<2x128xf32> to vector<2x32xf32>
    %141 = arith.negf %140 : vector<2x32xf32>
    %142 = math.exp %141 : vector<2x32xf32>
    %cst_47 = arith.constant 1.000000e+00 : f32
    %143 = vector.broadcast %cst_47 : f32 to vector<2x32xf32>
    %144 = arith.addf %143, %142 : vector<2x32xf32>
    %145 = arith.divf %143, %144 : vector<2x32xf32>
    %146 = vector.extract_strided_slice %139 {offsets = [0, 32], sizes = [2, 32], strides = [1, 1]} : vector<2x128xf32> to vector<2x32xf32>
    %147 = arith.negf %146 : vector<2x32xf32>
    %148 = math.exp %147 : vector<2x32xf32>
    %cst_48 = arith.constant 1.000000e+00 : f32
    %149 = vector.broadcast %cst_48 : f32 to vector<2x32xf32>
    %150 = arith.addf %149, %148 : vector<2x32xf32>
    %151 = arith.divf %149, %150 : vector<2x32xf32>
    %152 = vector.extract_strided_slice %139 {offsets = [0, 64], sizes = [2, 32], strides = [1, 1]} : vector<2x128xf32> to vector<2x32xf32>
    %153 = math.tanh %152 : vector<2x32xf32>
    %154 = vector.extract_strided_slice %139 {offsets = [0, 96], sizes = [2, 32], strides = [1, 1]} : vector<2x128xf32> to vector<2x32xf32>
    %155 = arith.negf %154 : vector<2x32xf32>
    %156 = math.exp %155 : vector<2x32xf32>
    %cst_49 = arith.constant 1.000000e+00 : f32
    %157 = vector.broadcast %cst_49 : f32 to vector<2x32xf32>
    %158 = arith.addf %157, %156 : vector<2x32xf32>
    %159 = arith.divf %157, %158 : vector<2x32xf32>
    %160 = arith.mulf %151, %125 : vector<2x32xf32>
    %161 = arith.mulf %145, %153 : vector<2x32xf32>
    %162 = arith.addf %160, %161 : vector<2x32xf32>
    %163 = math.tanh %162 : vector<2x32xf32>
    %164 = arith.mulf %159, %163 : vector<2x32xf32>
    %165 = arith.truncf %164 : vector<2x32xf32> to vector<2x32xbf16>
    %166 = arith.index_cast %c3_i32 : i32 to index
    %c0_50 = arith.constant 0 : index
    %c0_51 = arith.constant 0 : index
    %167 = vector.load %arg14[%166, %c0_50, %c0_51] : memref<8x2x32xbf16, #tpu.memory_space<vmem>>, vector<1x2x32xbf16>
    %168 = vector.shape_cast %167 : vector<1x2x32xbf16> to vector<2x32xbf16>
    %169 = vector.shape_cast %165 : vector<2x32xbf16> to vector<1x2x32xbf16>
    tpu.vector_store %arg14[%166, %c0_50, %c0_51], %169 {strides = array<i32>} : memref<8x2x32xbf16, #tpu.memory_space<vmem>>, vector<1x2x32xbf16>,
    %c4_i32 = arith.constant 4 : i32
    %170 = arith.index_cast %c4_i32 : i32 to index
    %c0_52 = arith.constant 0 : index
    %c0_53 = arith.constant 0 : index
    %171 = vector.load %arg13[%170, %c0_52, %c0_53] : memref<8x2x128xbf16, #tpu.memory_space<vmem>>, vector<1x2x128xbf16>
    %172 = vector.shape_cast %171 : vector<1x2x128xbf16> to vector<2x128xbf16>
    %173 = arith.extf %172 : vector<2x128xbf16> to vector<2x128xf32>
    %174 = arith.truncf %164 : vector<2x32xf32> to vector<2x32xbf16>
    %cst_54 = arith.constant dense<0.000000e+00> : vector<2x128xf32>
    %175 = tpu.matmul %174, %19, %cst_54 {dimension_numbers = #tpu.dot_dimension_numbers<[1], [0], [0], [1], [0, 0, 1, 1], [], []>} : vector<2x32xbf16>, vector<32x128xbf16>, vector<2x128xf32> -> vector<2x128xf32>
    %176 = arith.addf %173, %175 : vector<2x128xf32>
    %177 = vector.extract_strided_slice %176 {offsets = [0, 0], sizes = [2, 32], strides = [1, 1]} : vector<2x128xf32> to vector<2x32xf32>
    %178 = arith.negf %177 : vector<2x32xf32>
    %179 = math.exp %178 : vector<2x32xf32>
    %cst_55 = arith.constant 1.000000e+00 : f32
    %180 = vector.broadcast %cst_55 : f32 to vector<2x32xf32>
    %181 = arith.addf %180, %179 : vector<2x32xf32>
    %182 = arith.divf %180, %181 : vector<2x32xf32>
    %183 = vector.extract_strided_slice %176 {offsets = [0, 32], sizes = [2, 32], strides = [1, 1]} : vector<2x128xf32> to vector<2x32xf32>
    %184 = arith.negf %183 : vector<2x32xf32>
    %185 = math.exp %184 : vector<2x32xf32>
    %cst_56 = arith.constant 1.000000e+00 : f32
    %186 = vector.broadcast %cst_56 : f32 to vector<2x32xf32>
    %187 = arith.addf %186, %185 : vector<2x32xf32>
    %188 = arith.divf %186, %187 : vector<2x32xf32>
    %189 = vector.extract_strided_slice %176 {offsets = [0, 64], sizes = [2, 32], strides = [1, 1]} : vector<2x128xf32> to vector<2x32xf32>
    %190 = math.tanh %189 : vector<2x32xf32>
    %191 = vector.extract_strided_slice %176 {offsets = [0, 96], sizes = [2, 32], strides = [1, 1]} : vector<2x128xf32> to vector<2x32xf32>
    %192 = arith.negf %191 : vector<2x32xf32>
    %193 = math.exp %192 : vector<2x32xf32>
    %cst_57 = arith.constant 1.000000e+00 : f32
    %194 = vector.broadcast %cst_57 : f32 to vector<2x32xf32>
    %195 = arith.addf %194, %193 : vector<2x32xf32>
    %196 = arith.divf %194, %195 : vector<2x32xf32>
    %197 = arith.mulf %188, %162 : vector<2x32xf32>
    %198 = arith.mulf %182, %190 : vector<2x32xf32>
    %199 = arith.addf %197, %198 : vector<2x32xf32>
    %200 = math.tanh %199 : vector<2x32xf32>
    %201 = arith.mulf %196, %200 : vector<2x32xf32>
    %202 = arith.truncf %201 : vector<2x32xf32> to vector<2x32xbf16>
    %203 = arith.index_cast %c4_i32 : i32 to index
    %c0_58 = arith.constant 0 : index
    %c0_59 = arith.constant 0 : index
    %204 = vector.load %arg14[%203, %c0_58, %c0_59] : memref<8x2x32xbf16, #tpu.memory_space<vmem>>, vector<1x2x32xbf16>
    %205 = vector.shape_cast %204 : vector<1x2x32xbf16> to vector<2x32xbf16>
    %206 = vector.shape_cast %202 : vector<2x32xbf16> to vector<1x2x32xbf16>
    tpu.vector_store %arg14[%203, %c0_58, %c0_59], %206 {strides = array<i32>} : memref<8x2x32xbf16, #tpu.memory_space<vmem>>, vector<1x2x32xbf16>,
    %c5_i32 = arith.constant 5 : i32
    %207 = arith.index_cast %c5_i32 : i32 to index
    %c0_60 = arith.constant 0 : index
    %c0_61 = arith.constant 0 : index
    %208 = vector.load %arg13[%207, %c0_60, %c0_61] : memref<8x2x128xbf16, #tpu.memory_space<vmem>>, vector<1x2x128xbf16>
    %209 = vector.shape_cast %208 : vector<1x2x128xbf16> to vector<2x128xbf16>
    %210 = arith.extf %209 : vector<2x128xbf16> to vector<2x128xf32>
    %211 = arith.truncf %201 : vector<2x32xf32> to vector<2x32xbf16>
    %cst_62 = arith.constant dense<0.000000e+00> : vector<2x128xf32>
    %212 = tpu.matmul %211, %19, %cst_62 {dimension_numbers = #tpu.dot_dimension_numbers<[1], [0], [0], [1], [0, 0, 1, 1], [], []>} : vector<2x32xbf16>, vector<32x128xbf16>, vector<2x128xf32> -> vector<2x128xf32>
    %213 = arith.addf %210, %212 : vector<2x128xf32>
    %214 = vector.extract_strided_slice %213 {offsets = [0, 0], sizes = [2, 32], strides = [1, 1]} : vector<2x128xf32> to vector<2x32xf32>
    %215 = arith.negf %214 : vector<2x32xf32>
    %216 = math.exp %215 : vector<2x32xf32>
    %cst_63 = arith.constant 1.000000e+00 : f32
    %217 = vector.broadcast %cst_63 : f32 to vector<2x32xf32>
    %218 = arith.addf %217, %216 : vector<2x32xf32>
    %219 = arith.divf %217, %218 : vector<2x32xf32>
    %220 = vector.extract_strided_slice %213 {offsets = [0, 32], sizes = [2, 32], strides = [1, 1]} : vector<2x128xf32> to vector<2x32xf32>
    %221 = arith.negf %220 : vector<2x32xf32>
    %222 = math.exp %221 : vector<2x32xf32>
    %cst_64 = arith.constant 1.000000e+00 : f32
    %223 = vector.broadcast %cst_64 : f32 to vector<2x32xf32>
    %224 = arith.addf %223, %222 : vector<2x32xf32>
    %225 = arith.divf %223, %224 : vector<2x32xf32>
    %226 = vector.extract_strided_slice %213 {offsets = [0, 64], sizes = [2, 32], strides = [1, 1]} : vector<2x128xf32> to vector<2x32xf32>
    %227 = math.tanh %226 : vector<2x32xf32>
    %228 = vector.extract_strided_slice %213 {offsets = [0, 96], sizes = [2, 32], strides = [1, 1]} : vector<2x128xf32> to vector<2x32xf32>
    %229 = arith.negf %228 : vector<2x32xf32>
    %230 = math.exp %229 : vector<2x32xf32>
    %cst_65 = arith.constant 1.000000e+00 : f32
    %231 = vector.broadcast %cst_65 : f32 to vector<2x32xf32>
    %232 = arith.addf %231, %230 : vector<2x32xf32>
    %233 = arith.divf %231, %232 : vector<2x32xf32>
    %234 = arith.mulf %225, %199 : vector<2x32xf32>
    %235 = arith.mulf %219, %227 : vector<2x32xf32>
    %236 = arith.addf %234, %235 : vector<2x32xf32>
    %237 = math.tanh %236 : vector<2x32xf32>
    %238 = arith.mulf %233, %237 : vector<2x32xf32>
    %239 = arith.truncf %238 : vector<2x32xf32> to vector<2x32xbf16>
    %240 = arith.index_cast %c5_i32 : i32 to index
    %c0_66 = arith.constant 0 : index
    %c0_67 = arith.constant 0 : index
    %241 = vector.load %arg14[%240, %c0_66, %c0_67] : memref<8x2x32xbf16, #tpu.memory_space<vmem>>, vector<1x2x32xbf16>
    %242 = vector.shape_cast %241 : vector<1x2x32xbf16> to vector<2x32xbf16>
    %243 = vector.shape_cast %239 : vector<2x32xbf16> to vector<1x2x32xbf16>
    tpu.vector_store %arg14[%240, %c0_66, %c0_67], %243 {strides = array<i32>} : memref<8x2x32xbf16, #tpu.memory_space<vmem>>, vector<1x2x32xbf16>,
    %c6_i32 = arith.constant 6 : i32
    %244 = arith.index_cast %c6_i32 : i32 to index
    %c0_68 = arith.constant 0 : index
    %c0_69 = arith.constant 0 : index
    %245 = vector.load %arg13[%244, %c0_68, %c0_69] : memref<8x2x128xbf16, #tpu.memory_space<vmem>>, vector<1x2x128xbf16>
    %246 = vector.shape_cast %245 : vector<1x2x128xbf16> to vector<2x128xbf16>
    %247 = arith.extf %246 : vector<2x128xbf16> to vector<2x128xf32>
    %248 = arith.truncf %238 : vector<2x32xf32> to vector<2x32xbf16>
    %cst_70 = arith.constant dense<0.000000e+00> : vector<2x128xf32>
    %249 = tpu.matmul %248, %19, %cst_70 {dimension_numbers = #tpu.dot_dimension_numbers<[1], [0], [0], [1], [0, 0, 1, 1], [], []>} : vector<2x32xbf16>, vector<32x128xbf16>, vector<2x128xf32> -> vector<2x128xf32>
    %250 = arith.addf %247, %249 : vector<2x128xf32>
    %251 = vector.extract_strided_slice %250 {offsets = [0, 0], sizes = [2, 32], strides = [1, 1]} : vector<2x128xf32> to vector<2x32xf32>
    %252 = arith.negf %251 : vector<2x32xf32>
    %253 = math.exp %252 : vector<2x32xf32>
    %cst_71 = arith.constant 1.000000e+00 : f32
    %254 = vector.broadcast %cst_71 : f32 to vector<2x32xf32>
    %255 = arith.addf %254, %253 : vector<2x32xf32>
    %256 = arith.divf %254, %255 : vector<2x32xf32>
    %257 = vector.extract_strided_slice %250 {offsets = [0, 32], sizes = [2, 32], strides = [1, 1]} : vector<2x128xf32> to vector<2x32xf32>
    %258 = arith.negf %257 : vector<2x32xf32>
    %259 = math.exp %258 : vector<2x32xf32>
    %cst_72 = arith.constant 1.000000e+00 : f32
    %260 = vector.broadcast %cst_72 : f32 to vector<2x32xf32>
    %261 = arith.addf %260, %259 : vector<2x32xf32>
    %262 = arith.divf %260, %261 : vector<2x32xf32>
    %263 = vector.extract_strided_slice %250 {offsets = [0, 64], sizes = [2, 32], strides = [1, 1]} : vector<2x128xf32> to vector<2x32xf32>
    %264 = math.tanh %263 : vector<2x32xf32>
    %265 = vector.extract_strided_slice %250 {offsets = [0, 96], sizes = [2, 32], strides = [1, 1]} : vector<2x128xf32> to vector<2x32xf32>
    %266 = arith.negf %265 : vector<2x32xf32>
    %267 = math.exp %266 : vector<2x32xf32>
    %cst_73 = arith.constant 1.000000e+00 : f32
    %268 = vector.broadcast %cst_73 : f32 to vector<2x32xf32>
    %269 = arith.addf %268, %267 : vector<2x32xf32>
    %270 = arith.divf %268, %269 : vector<2x32xf32>
    %271 = arith.mulf %262, %236 : vector<2x32xf32>
    %272 = arith.mulf %256, %264 : vector<2x32xf32>
    %273 = arith.addf %271, %272 : vector<2x32xf32>
    %274 = math.tanh %273 : vector<2x32xf32>
    %275 = arith.mulf %270, %274 : vector<2x32xf32>
    %276 = arith.truncf %275 : vector<2x32xf32> to vector<2x32xbf16>
    %277 = arith.index_cast %c6_i32 : i32 to index
    %c0_74 = arith.constant 0 : index
    %c0_75 = arith.constant 0 : index
    %278 = vector.load %arg14[%277, %c0_74, %c0_75] : memref<8x2x32xbf16, #tpu.memory_space<vmem>>, vector<1x2x32xbf16>
    %279 = vector.shape_cast %278 : vector<1x2x32xbf16> to vector<2x32xbf16>
    %280 = vector.shape_cast %276 : vector<2x32xbf16> to vector<1x2x32xbf16>
    tpu.vector_store %arg14[%277, %c0_74, %c0_75], %280 {strides = array<i32>} : memref<8x2x32xbf16, #tpu.memory_space<vmem>>, vector<1x2x32xbf16>,
    %c7_i32 = arith.constant 7 : i32
    %281 = arith.index_cast %c7_i32 : i32 to index
    %c0_76 = arith.constant 0 : index
    %c0_77 = arith.constant 0 : index
    %282 = vector.load %arg13[%281, %c0_76, %c0_77] : memref<8x2x128xbf16, #tpu.memory_space<vmem>>, vector<1x2x128xbf16>
    %283 = vector.shape_cast %282 : vector<1x2x128xbf16> to vector<2x128xbf16>
    %284 = arith.extf %283 : vector<2x128xbf16> to vector<2x128xf32>
    %285 = arith.truncf %275 : vector<2x32xf32> to vector<2x32xbf16>
    %cst_78 = arith.constant dense<0.000000e+00> : vector<2x128xf32>
    %286 = tpu.matmul %285, %19, %cst_78 {dimension_numbers = #tpu.dot_dimension_numbers<[1], [0], [0], [1], [0, 0, 1, 1], [], []>} : vector<2x32xbf16>, vector<32x128xbf16>, vector<2x128xf32> -> vector<2x128xf32>
    %287 = arith.addf %284, %286 : vector<2x128xf32>
    %288 = vector.extract_strided_slice %287 {offsets = [0, 0], sizes = [2, 32], strides = [1, 1]} : vector<2x128xf32> to vector<2x32xf32>
    %289 = arith.negf %288 : vector<2x32xf32>
    %290 = math.exp %289 : vector<2x32xf32>
    %cst_79 = arith.constant 1.000000e+00 : f32
    %291 = vector.broadcast %cst_79 : f32 to vector<2x32xf32>
    %292 = arith.addf %291, %290 : vector<2x32xf32>
    %293 = arith.divf %291, %292 : vector<2x32xf32>
    %294 = vector.extract_strided_slice %287 {offsets = [0, 32], sizes = [2, 32], strides = [1, 1]} : vector<2x128xf32> to vector<2x32xf32>
    %295 = arith.negf %294 : vector<2x32xf32>
    %296 = math.exp %295 : vector<2x32xf32>
    %cst_80 = arith.constant 1.000000e+00 : f32
    %297 = vector.broadcast %cst_80 : f32 to vector<2x32xf32>
    %298 = arith.addf %297, %296 : vector<2x32xf32>
    %299 = arith.divf %297, %298 : vector<2x32xf32>
    %300 = vector.extract_strided_slice %287 {offsets = [0, 64], sizes = [2, 32], strides = [1, 1]} : vector<2x128xf32> to vector<2x32xf32>
    %301 = math.tanh %300 : vector<2x32xf32>
    %302 = vector.extract_strided_slice %287 {offsets = [0, 96], sizes = [2, 32], strides = [1, 1]} : vector<2x128xf32> to vector<2x32xf32>
    %303 = arith.negf %302 : vector<2x32xf32>
    %304 = math.exp %303 : vector<2x32xf32>
    %cst_81 = arith.constant 1.000000e+00 : f32
    %305 = vector.broadcast %cst_81 : f32 to vector<2x32xf32>
    %306 = arith.addf %305, %304 : vector<2x32xf32>
    %307 = arith.divf %305, %306 : vector<2x32xf32>
    %308 = arith.mulf %299, %273 : vector<2x32xf32>
    %309 = arith.mulf %293, %301 : vector<2x32xf32>
    %310 = arith.addf %308, %309 : vector<2x32xf32>
    %311 = math.tanh %310 : vector<2x32xf32>
    %312 = arith.mulf %307, %311 : vector<2x32xf32>
    %313 = arith.truncf %312 : vector<2x32xf32> to vector<2x32xbf16>
    %314 = arith.index_cast %c7_i32 : i32 to index
    %c0_82 = arith.constant 0 : index
    %c0_83 = arith.constant 0 : index
    %315 = vector.load %arg14[%314, %c0_82, %c0_83] : memref<8x2x32xbf16, #tpu.memory_space<vmem>>, vector<1x2x32xbf16>
    %316 = vector.shape_cast %315 : vector<1x2x32xbf16> to vector<2x32xbf16>
    %317 = vector.shape_cast %313 : vector<2x32xbf16> to vector<1x2x32xbf16>
    tpu.vector_store %arg14[%314, %c0_82, %c0_83], %317 {strides = array<i32>} : memref<8x2x32xbf16, #tpu.memory_space<vmem>>, vector<1x2x32xbf16>,
    %c8_i32 = arith.constant 8 : i32
    %c0_84 = arith.constant 0 : index
    %c0_85 = arith.constant 0 : index
    %318 = vector.load %arg15[%c0_84, %c0_85] : memref<2x32xf32, #tpu.memory_space<vmem>>, vector<2x32xf32>
    tpu.vector_store %arg15[%c0_84, %c0_85], %312 {strides = array<i32>} : memref<2x32xf32, #tpu.memory_space<vmem>>, vector<2x32xf32>,
    %c0_86 = arith.constant 0 : index
    %c0_87 = arith.constant 0 : index
    %319 = vector.load %arg16[%c0_86, %c0_87] : memref<2x32xf32, #tpu.memory_space<vmem>>, vector<2x32xf32>
    tpu.vector_store %arg16[%c0_86, %c0_87], %310 {strides = array<i32>} : memref<2x32xf32, #tpu.memory_space<vmem>>, vector<2x32xf32>,
    %c0_88 = arith.constant 0 : index
    %c0_89 = arith.constant 0 : index
    %c0_90 = arith.constant 0 : index
    %320 = vector.load %arg14[%c0_88, %c0_89, %c0_90] : memref<8x2x32xbf16, #tpu.memory_space<vmem>>, vector<8x2x32xbf16>
    %321 = vector.shape_cast %320 : vector<8x2x32xbf16> to vector<16x32xbf16>
    %c0_91 = arith.constant 0 : index
    %c0_92 = arith.constant 0 : index
    %c0_93 = arith.constant 0 : index
    %322 = vector.load %arg4[%c0_91, %c0_92, %c0_93] : memref<1x16x32xbf16, #tpu.memory_space<vmem>>, vector<1x16x32xbf16>
    %323 = vector.shape_cast %322 : vector<1x16x32xbf16> to vector<16x32xbf16>
    %324 = tpu.concatenate %321, %323 in 1 : vector<16x32xbf16>, vector<16x32xbf16> -> vector<16x64xbf16>
    %c0_94 = arith.constant 0 : index
    %c0_95 = arith.constant 0 : index
    %325 = vector.load %arg8[%c0_94, %c0_95] : memref<64x32xbf16, #tpu.memory_space<vmem>>, vector<64x32xbf16>
    %cst_96 = arith.constant dense<0.000000e+00> : vector<16x32xf32>
    %326 = tpu.matmul %324, %325, %cst_96 {dimension_numbers = #tpu.dot_dimension_numbers<[1], [0], [0], [1], [0, 0, 1, 1], [], []>} : vector<16x64xbf16>, vector<64x32xbf16>, vector<16x32xf32> -> vector<16x32xf32>
    %c0_97 = arith.constant 0 : index
    %c0_98 = arith.constant 0 : index
    %327 = vector.load %arg9[%c0_97, %c0_98] : memref<1x32xf32, #tpu.memory_space<vmem>>, vector<1x32xf32>
    %328 = vector.broadcast %327 : vector<1x32xf32> to vector<16x32xf32>
    %329 = arith.addf %326, %328 : vector<16x32xf32>
    %cst_99 = arith.constant 0.000000e+00 : f32
    %330 = vector.broadcast %cst_99 : f32 to vector<16x32xf32>
    %331 = arith.maximumf %329, %330 : vector<16x32xf32>
    %c0_100 = arith.constant 0 : index
    %c0_101 = arith.constant 0 : index
    %332 = vector.load %arg10[%c0_100, %c0_101] : memref<1x32xf32, #tpu.memory_space<vmem>>, vector<1x32xf32>
    %333 = vector.broadcast %332 : vector<1x32xf32> to vector<16x32xf32>
    %334 = arith.mulf %331, %333 : vector<16x32xf32>
    %335 = vector.shape_cast %334 : vector<16x32xf32> to vector<8x2x32xf32>
    %cst_102 = arith.constant dense<0.000000e+00> : vector<8x2xf32>
    %336 = vector.multi_reduction <add>, %335, %cst_102 [2] : vector<8x2x32xf32> to vector<8x2xf32>
    %c0_103 = arith.constant 0 : index
    %c0_104 = arith.constant 0 : index
    %337 = vector.load %arg11[%c0_103, %c0_104] : memref<1x1xf32, #tpu.memory_space<vmem>>, vector<1x1xf32>
    %338 = vector.broadcast %337 : vector<1x1xf32> to vector<8x2xf32>
    %339 = arith.addf %336, %338 : vector<8x2xf32>
    %340 = arith.negf %339 : vector<8x2xf32>
    %341 = math.exp %340 : vector<8x2xf32>
    %cst_105 = arith.constant 1.000000e+00 : f32
    %342 = vector.broadcast %cst_105 : f32 to vector<8x2xf32>
    %343 = arith.addf %342, %341 : vector<8x2xf32>
    %344 = arith.divf %342, %343 : vector<8x2xf32>
    %c0_106 = arith.constant 0 : index
    %c0_107 = arith.constant 0 : index
    %c0_108 = arith.constant 0 : index
    %345 = vector.load %arg12[%c0_106, %c0_107, %c0_108] : memref<1x8x2xf32, #tpu.memory_space<vmem>>, vector<1x8x2xf32>
    %346 = vector.shape_cast %345 : vector<1x8x2xf32> to vector<8x2xf32>
    %347 = vector.shape_cast %344 : vector<8x2xf32> to vector<1x8x2xf32>
    tpu.vector_store %arg12[%c0_106, %c0_107, %c0_108], %347 {strides = array<i32>} : memref<1x8x2xf32, #tpu.memory_space<vmem>>, vector<1x8x2xf32>,
    return
  }
  func.func @transform_0(%arg0: i32, %arg1: i32) -> (i32, i32, i32) {
    %c0_i32 = arith.constant 0 : i32
    %c0_i32_0 = arith.constant 0 : i32
    return %arg0, %arg1, %c0_i32 : i32, i32, i32
  }
  func.func @transform_1(%arg0: i32, %arg1: i32) -> (i32, i32, i32) {
    %c0_i32 = arith.constant 0 : i32
    %c0_i32_0 = arith.constant 0 : i32
    return %arg0, %arg1, %c0_i32 : i32, i32, i32
  }
  func.func @transform_2(%arg0: i32, %arg1: i32) -> (i32, i32, i32) {
    %c0_i32 = arith.constant 0 : i32
    %c0_i32_0 = arith.constant 0 : i32
    return %arg0, %arg1, %c0_i32 : i32, i32, i32
  }
  func.func @transform_3(%arg0: i32, %arg1: i32) -> (i32, i32) {
    %c0_i32 = arith.constant 0 : i32
    %c0_i32_0 = arith.constant 0 : i32
    %c0_i32_1 = arith.constant 0 : i32
    return %c0_i32, %c0_i32_0 : i32, i32
  }
  func.func @transform_4(%arg0: i32, %arg1: i32) -> (i32, i32) {
    %c0_i32 = arith.constant 0 : i32
    %c0_i32_0 = arith.constant 0 : i32
    %c0_i32_1 = arith.constant 0 : i32
    return %c0_i32, %c0_i32_0 : i32, i32
  }
  func.func @transform_5(%arg0: i32, %arg1: i32) -> (i32, i32) {
    %c0_i32 = arith.constant 0 : i32
    %c0_i32_0 = arith.constant 0 : i32
    %c0_i32_1 = arith.constant 0 : i32
    return %c0_i32, %c0_i32_0 : i32, i32
  }
  func.func @transform_6(%arg0: i32, %arg1: i32) -> (i32, i32) {
    %c0_i32 = arith.constant 0 : i32
    %c0_i32_0 = arith.constant 0 : i32
    %c0_i32_1 = arith.constant 0 : i32
    return %c0_i32, %c0_i32_0 : i32, i32
  }
  func.func @transform_7(%arg0: i32, %arg1: i32) -> (i32, i32) {
    %c0_i32 = arith.constant 0 : i32
    %c0_i32_0 = arith.constant 0 : i32
    %c0_i32_1 = arith.constant 0 : i32
    return %c0_i32, %c0_i32_0 : i32, i32
  }
  func.func @transform_8(%arg0: i32, %arg1: i32) -> (i32, i32) {
    %c0_i32 = arith.constant 0 : i32
    %c0_i32_0 = arith.constant 0 : i32
    %c0_i32_1 = arith.constant 0 : i32
    return %c0_i32, %c0_i32_0 : i32, i32
  }
  func.func @transform_9(%arg0: i32, %arg1: i32) -> (i32, i32) {
    %c0_i32 = arith.constant 0 : i32
    %c0_i32_0 = arith.constant 0 : i32
    %c0_i32_1 = arith.constant 0 : i32
    return %c0_i32, %c0_i32_0 : i32, i32
  }
  func.func @transform_10(%arg0: i32, %arg1: i32) -> (i32, i32, i32) {
    %c0_i32 = arith.constant 0 : i32
    %c0_i32_0 = arith.constant 0 : i32
    return %arg0, %arg1, %c0_i32 : i32, i32, i32
  }
}

</mosaic_0001>

<llo_original>
// kernel: dkt_forward.1
$region0: #{dkt_forward.1}
  #allocation0 [shape = 'u32[]', space=smem, size = 0x4, offset = 0x4, fixed_abs, tag = 'smem constant byte address 0x4 - core index']
  #allocation1 [shape = 'u32[72,128]{1,0:T(1,128)}', space=vmem, size = 0x9000, scoped, tag = 'internal scratch']
  #allocation2 [shape = 'bf16[8,2,128]{2,1,0:T(2,128)(2,1)}', space=vmem, size = 0x1000, scoped, tag = 'scratch operand']
  #allocation3 [shape = 'bf16[8,2,32]{2,1,0:T(2,128)(2,1)}', space=vmem, size = 0x1000, scoped, tag = 'scratch operand']
  #allocation4 [shape = 'f32[2,32]{1,0:T(2,128)}', space=vmem, size = 0x400, scoped, tag = 'scratch operand']
  #allocation5 [shape = 'f32[2,32]{1,0:T(2,128)}', space=vmem, size = 0x400, scoped, tag = 'scratch operand']
  #allocation6 [shape = 'f32[1,1]{1,0:T(1,128)S(1)}', space=vmem, size = 0x200, scoped, tag = 'scoped memory for dkt_forward.1']
  %s0 = inlined_call_operand.vmem [shape: bf16[1,32,32], index: 0, kind: input, shape index: {}]
  %s1 = inlined_call_operand.vmem [shape: bf16[1,32,1], index: 1, kind: input, shape index: {}]
  %s2 = inlined_call_operand.vmem [shape: bf16[1,32,32], index: 2, kind: input, shape index: {}]
  %s3 = inlined_call_operand.vmem [shape: bf16[64,128], index: 3, kind: input, shape index: {}]
  %s4 = inlined_call_operand.vmem [shape: bf16[32,128], index: 4, kind: input, shape index: {}]
  %s5 = inlined_call_operand.vmem [shape: f32[1,128], index: 5, kind: input, shape index: {}]
  %s6 = inlined_call_operand.vmem [shape: bf16[64,32], index: 6, kind: input, shape index: {}]
  %s7 = inlined_call_operand.vmem [shape: f32[1,32], index: 7, kind: input, shape index: {}]
  %s8 = inlined_call_operand.vmem [shape: f32[1,32], index: 8, kind: input, shape index: {}]
  %s9 = inlined_call_operand.<no memory space> [shape: f32[1,1], index: 9, kind: input, shape index: {}]
  %s10 = inlined_call_operand.vmem [shape: f32[1,16,2], index: 10, kind: output, shape index: {}]
  %s11 = sld [smem:[#allocation0]]
  $region77: #{dkt_forward.1} parent=0
    _
  %s13 = ssub.s32 1, %s11
  %s14 = scalar_select 0, %s13, %s11
  %v15 = vstv %s9
  %16 = vst [vmem:[#allocation6] sm:$0x1] %v15
  loop: start=0, step=1, limit=4
  $region2: #{dkt_forward.1} parent=0 // loop_pre_header
    _
  $region3: #{dkt_forward.1} parent=0 // loop_header
    %s18 = sphi 0, %s22
    %p19 = scmp.ge.s32.totalorder %s18, 4
    %s25 = sphi 0, %s37
    %s26 = sphi 0, %s33
    %s27 = sphi 0, %s25
    %s28 = sphi 0, %s26
    %s29 = sphi 0, %s27
    %s30 = sphi 0, %s28
    %s42 = sphi 0, %s44
    %s45 = sphi 0, %s42
    %s46 = sphi 0, %s45
    %s62 = sphi 0, %s46
    %s70 = sphi 0, %s72
    %s73 = sphi 0, %s70
    %s74 = sphi 0, %s73
    %s90 = sphi 0, %s74
    %s98 = sphi 0, %s100
    %s101 = sphi 0, %s98
    %s102 = sphi 0, %s101
    %s118 = sphi 0, %s102
    %s122 = sphi 0, %s122
    %s124 = sphi 0, %s122
    %s125 = sphi 0, %s124
    %s139 = sphi 0, %s125
    %s143 = sphi 0, %s143
    %s145 = sphi 0, %s143
    %s146 = sphi 0, %s145
    %s160 = sphi 0, %s146
    %s164 = sphi 0, %s164
    %s166 = sphi 0, %s164
    %s167 = sphi 0, %s166
    %s181 = sphi 0, %s167
    %s185 = sphi 0, %s185
    %s187 = sphi 0, %s185
    %s188 = sphi 0, %s187
    %s202 = sphi 0, %s188
    %s206 = sphi 0, %s206
    %s208 = sphi 0, %s206
    %s209 = sphi 0, %s208
    %s223 = sphi 0, %s209
    %s227 = sphi 0, %s227
    %s229 = sphi 0, %s227
    %s230 = sphi 0, %s229
    %s244 = sphi 0, %s230
    %s248 = sphi 0, %s248
    %s250 = sphi 0, %s248
    %s251 = sphi 0, %s250
    %s265 = sphi 0, %s251
    %s273 = sphi 0, %s275
    %s276 = sphi 0, %s273
    %s277 = sphi 0, %s276
    %s293 = sphi 0, %s277
  $region4: #{dkt_forward.1} parent=0 // loop_header_branch
    %21 = sbr.rel (%p19) target = $region8
  $region5: #{dkt_forward.1} parent=0 // loop_body
    %s23 = ssub.s32 %s18, 1
    %s24 = ssub.s32 %s18, 2
    %s31 = sadd.s32 1, %s26
    %p32 = scmp.ge.s32.totalorder %s31, 2
    %s33 = scalar_select %p32, 0, %s31
    %s34 = sadd.s32 1, %s25
    %s35 = scalar_select %p32, %s34, %s25
    %p36 = scmp.ge.s32.totalorder %s35, 1
    %s37 = scalar_select %p36, 0, %s35
    %s38 = ssub.s32 %s25, %s37
    %s39 = ssub.s32 %s26, %s33
    %s40 = sor.u32 %s38, %s39
    %p41 = scmp.eq.s32.totalorder %s40, 0
    %s43 = sadd.s32 %s42, 1
    %s44 = scalar_select %p41, %s42, %s43
    %p47 = pneg %p41
    %p48 = scmp.eq.s32.totalorder %s18, 1
    %p49 = por %p47, %p48
    %p50 = scmp.ne.s32.totalorder %s42, %s45
    %p51 = scmp.eq.s32.totalorder %s18, 0
    %p52 = por %p50, %p51
    %p53 = scmp.ne.s32.totalorder %s42, %s45
    %p54 = scmp.eq.s32.totalorder %s23, 1
    %p55 = por %p53, %p54
    %p56 = scmp.ne.s32.totalorder %s45, %s46
    %p57 = scmp.eq.s32.totalorder %s23, 0
    %p58 = por %p56, %p57
    %p59 = scmp.ne.s32.totalorder %s45, %s46
    %p60 = scmp.eq.s32.totalorder %s24, 1
    %p61 = por %p59, %p60
    %p63 = scmp.ne.s32.totalorder %s46, %s62
    %p64 = scmp.eq.s32.totalorder %s24, 0
    %p65 = por %p63, %p64
    %s66 = ssub.s32 %s25, %s37
    %s67 = ssub.s32 %s26, %s33
    %s68 = sor.u32 %s66, %s67
    %p69 = scmp.eq.s32.totalorder %s68, 0
    %s71 = sadd.s32 %s70, 1
    %s72 = scalar_select %p69, %s70, %s71
    %p75 = pneg %p69
    %p76 = scmp.eq.s32.totalorder %s18, 1
    %p77 = por %p75, %p76
    %p78 = scmp.ne.s32.totalorder %s70, %s73
    %p79 = scmp.eq.s32.totalorder %s18, 0
    %p80 = por %p78, %p79
    %p81 = scmp.ne.s32.totalorder %s70, %s73
    %p82 = scmp.eq.s32.totalorder %s23, 1
    %p83 = por %p81, %p82
    %p84 = scmp.ne.s32.totalorder %s73, %s74
    %p85 = scmp.eq.s32.totalorder %s23, 0
    %p86 = por %p84, %p85
    %p87 = scmp.ne.s32.totalorder %s73, %s74
    %p88 = scmp.eq.s32.totalorder %s24, 1
    %p89 = por %p87, %p88
    %p91 = scmp.ne.s32.totalorder %s74, %s90
    %p92 = scmp.eq.s32.totalorder %s24, 0
    %p93 = por %p91, %p92
    %s94 = ssub.s32 %s25, %s37
    %s95 = ssub.s32 %s26, %s33
    %s96 = sor.u32 %s94, %s95
    %p97 = scmp.eq.s32.totalorder %s96, 0
    %s99 = sadd.s32 %s98, 1
    %s100 = scalar_select %p97, %s98, %s99
    %p103 = pneg %p97
    %p104 = scmp.eq.s32.totalorder %s18, 1
    %p105 = por %p103, %p104
    %p106 = scmp.ne.s32.totalorder %s98, %s101
    %p107 = scmp.eq.s32.totalorder %s18, 0
    %p108 = por %p106, %p107
    %p109 = scmp.ne.s32.totalorder %s98, %s101
    %p110 = scmp.eq.s32.totalorder %s23, 1
    %p111 = por %p109, %p110
    %p112 = scmp.ne.s32.totalorder %s101, %s102
    %p113 = scmp.eq.s32.totalorder %s23, 0
    %p114 = por %p112, %p113
    %p115 = scmp.ne.s32.totalorder %s101, %s102
    %p116 = scmp.eq.s32.totalorder %s24, 1
    %p117 = por %p115, %p116
    %p119 = scmp.ne.s32.totalorder %s102, %s118
    %p120 = scmp.eq.s32.totalorder %s24, 0
    %p121 = por %p119, %p120
    %s123 = sadd.s32 %s122, 1
    %p126 = scmp.eq.s32.totalorder %s18, 1
    %p127 = scmp.ne.s32.totalorder %s122, %s124
    %p128 = scmp.eq.s32.totalorder %s18, 0
    %p129 = por %p127, %p128
    %p130 = scmp.ne.s32.totalorder %s122, %s124
    %p131 = scmp.eq.s32.totalorder %s23, 1
    %p132 = por %p130, %p131
    %p133 = scmp.ne.s32.totalorder %s124, %s125
    %p134 = scmp.eq.s32.totalorder %s23, 0
    %p135 = por %p133, %p134
    %p136 = scmp.ne.s32.totalorder %s124, %s125
    %p137 = scmp.eq.s32.totalorder %s24, 1
    %p138 = por %p136, %p137
    %p140 = scmp.ne.s32.totalorder %s125, %s139
    %p141 = scmp.eq.s32.totalorder %s24, 0
    %p142 = por %p140, %p141
    %s144 = sadd.s32 %s143, 1
    %p147 = scmp.eq.s32.totalorder %s18, 1
    %p148 = scmp.ne.s32.totalorder %s143, %s145
    %p149 = scmp.eq.s32.totalorder %s18, 0
    %p150 = por %p148, %p149
    %p151 = scmp.ne.s32.totalorder %s143, %s145
    %p152 = scmp.eq.s32.totalorder %s23, 1
    %p153 = por %p151, %p152
    %p154 = scmp.ne.s32.totalorder %s145, %s146
    %p155 = scmp.eq.s32.totalorder %s23, 0
    %p156 = por %p154, %p155
    %p157 = scmp.ne.s32.totalorder %s145, %s146
    %p158 = scmp.eq.s32.totalorder %s24, 1
    %p159 = por %p157, %p158
    %p161 = scmp.ne.s32.totalorder %s146, %s160
    %p162 = scmp.eq.s32.totalorder %s24, 0
    %p163 = por %p161, %p162
    %s165 = sadd.s32 %s164, 1
    %p168 = scmp.eq.s32.totalorder %s18, 1
    %p169 = scmp.ne.s32.totalorder %s164, %s166
    %p170 = scmp.eq.s32.totalorder %s18, 0
    %p171 = por %p169, %p170
    %p172 = scmp.ne.s32.totalorder %s164, %s166
    %p173 = scmp.eq.s32.totalorder %s23, 1
    %p174 = por %p172, %p173
    %p175 = scmp.ne.s32.totalorder %s166, %s167
    %p176 = scmp.eq.s32.totalorder %s23, 0
    %p177 = por %p175, %p176
    %p178 = scmp.ne.s32.totalorder %s166, %s167
    %p179 = scmp.eq.s32.totalorder %s24, 1
    %p180 = por %p178, %p179
    %p182 = scmp.ne.s32.totalorder %s167, %s181
    %p183 = scmp.eq.s32.totalorder %s24, 0
    %p184 = por %p182, %p183
    %s186 = sadd.s32 %s185, 1
    %p189 = scmp.eq.s32.totalorder %s18, 1
    %p190 = scmp.ne.s32.totalorder %s185, %s187
    %p191 = scmp.eq.s32.totalorder %s18, 0
    %p192 = por %p190, %p191
    %p193 = scmp.ne.s32.totalorder %s185, %s187
    %p194 = scmp.eq.s32.totalorder %s23, 1
    %p195 = por %p193, %p194
    %p196 = scmp.ne.s32.totalorder %s187, %s188
    %p197 = scmp.eq.s32.totalorder %s23, 0
    %p198 = por %p196, %p197
    %p199 = scmp.ne.s32.totalorder %s187, %s188
    %p200 = scmp.eq.s32.totalorder %s24, 1
    %p201 = por %p199, %p200
    %p203 = scmp.ne.s32.totalorder %s188, %s202
    %p204 = scmp.eq.s32.totalorder %s24, 0
    %p205 = por %p203, %p204
    %s207 = sadd.s32 %s206, 1
    %p210 = scmp.eq.s32.totalorder %s18, 1
    %p211 = scmp.ne.s32.totalorder %s206, %s208
    %p212 = scmp.eq.s32.totalorder %s18, 0
    %p213 = por %p211, %p212
    %p214 = scmp.ne.s32.totalorder %s206, %s208
    %p215 = scmp.eq.s32.totalorder %s23, 1
    %p216 = por %p214, %p215
    %p217 = scmp.ne.s32.totalorder %s208, %s209
    %p218 = scmp.eq.s32.totalorder %s23, 0
    %p219 = por %p217, %p218
    %p220 = scmp.ne.s32.totalorder %s208, %s209
    %p221 = scmp.eq.s32.totalorder %s24, 1
    %p222 = por %p220, %p221
    %p224 = scmp.ne.s32.totalorder %s209, %s223
    %p225 = scmp.eq.s32.totalorder %s24, 0
    %p226 = por %p224, %p225
    %s228 = sadd.s32 %s227, 1
    %p231 = scmp.eq.s32.totalorder %s18, 1
    %p232 = scmp.ne.s32.totalorder %s227, %s229
    %p233 = scmp.eq.s32.totalorder %s18, 0
    %p234 = por %p232, %p233
    %p235 = scmp.ne.s32.totalorder %s227, %s229
    %p236 = scmp.eq.s32.totalorder %s23, 1
    %p237 = por %p235, %p236
    %p238 = scmp.ne.s32.totalorder %s229, %s230
    %p239 = scmp.eq.s32.totalorder %s23, 0
    %p240 = por %p238, %p239
    %p241 = scmp.ne.s32.totalorder %s229, %s230
    %p242 = scmp.eq.s32.totalorder %s24, 1
    %p243 = por %p241, %p242
    %p245 = scmp.ne.s32.totalorder %s230, %s244
    %p246 = scmp.eq.s32.totalorder %s24, 0
    %p247 = por %p245, %p246
    %s249 = sadd.s32 %s248, 1
    %p252 = scmp.eq.s32.totalorder %s18, 1
    %p253 = scmp.ne.s32.totalorder %s248, %s250
    %p254 = scmp.eq.s32.totalorder %s18, 0
    %p255 = por %p253, %p254
    %p256 = scmp.ne.s32.totalorder %s248, %s250
    %p257 = scmp.eq.s32.totalorder %s23, 1
    %p258 = por %p256, %p257
    %p259 = scmp.ne.s32.totalorder %s250, %s251
    %p260 = scmp.eq.s32.totalorder %s23, 0
    %p261 = por %p259, %p260
    %p262 = scmp.ne.s32.totalorder %s250, %s251
    %p263 = scmp.eq.s32.totalorder %s24, 1
    %p264 = por %p262, %p263
    %p266 = scmp.ne.s32.totalorder %s251, %s265
    %p267 = scmp.eq.s32.totalorder %s24, 0
    %p268 = por %p266, %p267
    %s269 = ssub.s32 %s25, %s37
    %s270 = ssub.s32 %s26, %s33
    %s271 = sor.u32 %s269, %s270
    %p272 = scmp.eq.s32.totalorder %s271, 0
    %s274 = sadd.s32 %s273, 1
    %s275 = scalar_select %p272, %s273, %s274
    %p278 = pneg %p272
    %p279 = scmp.eq.s32.totalorder %s18, 1
    %p280 = por %p278, %p279
    %p281 = scmp.ne.s32.totalorder %s273, %s276
    %p282 = scmp.eq.s32.totalorder %s18, 0
    %p283 = por %p281, %p282
    %p284 = scmp.ne.s32.totalorder %s273, %s276
    %p285 = scmp.eq.s32.totalorder %s23, 1
    %p286 = por %p284, %p285
    %p287 = scmp.ne.s32.totalorder %s276, %s277
    %p288 = scmp.eq.s32.totalorder %s23, 0
    %p289 = por %p287, %p288
    %p290 = scmp.ne.s32.totalorder %s276, %s277
    %p291 = scmp.eq.s32.totalorder %s24, 1
    %p292 = por %p290, %p291
    %p294 = scmp.ne.s32.totalorder %s277, %s293
    %p295 = scmp.eq.s32.totalorder %s24, 0
    %p296 = por %p294, %p295
    %p297 = scmp.le.s32.totalorder 1, %s18
    %p298 = scmp.lt.s32.totalorder %s18, 3
    %p299 = pnand %p297, %p298
    %p300 = pneg %p299
    // Predicated region
    $region9: #{dkt_forward.1} parent=5 // pred_check
      _
    $region10: #{dkt_forward.1} parent=5 // pred_check_branch
      %302 = sbr.rel (%p299) target = $region12
    $region11: #{dkt_forward.1} parent=5 // pred_region
      %s303 = ssub.s32 %s18, 1
      // Predicated region
      $region13: #{dkt_forward.1} parent=11 // pred_check
        %p304 = pneg %p135
      $region14: #{dkt_forward.1} parent=11 // pred_check_branch
        %306 = sbr.rel (%p304) target = $region16
      $region15: #{dkt_forward.1} parent=11 // pred_region
        _
      $region16: #{dkt_forward.1} parent=11 // pred_fallthru
        _
      // Predicated region
      $region17: #{dkt_forward.1} parent=11 // pred_check
        %p307 = pneg %p156
      $region18: #{dkt_forward.1} parent=11 // pred_check_branch
        %309 = sbr.rel (%p307) target = $region20
      $region19: #{dkt_forward.1} parent=11 // pred_region
        _
      $region20: #{dkt_forward.1} parent=11 // pred_fallthru
        _
      // Predicated region
      $region21: #{dkt_forward.1} parent=11 // pred_check
        %p310 = pneg %p177
      $region22: #{dkt_forward.1} parent=11 // pred_check_branch
        %312 = sbr.rel (%p310) target = $region24
      $region23: #{dkt_forward.1} parent=11 // pred_region
        _
      $region24: #{dkt_forward.1} parent=11 // pred_fallthru
        _
      // Predicated region
      $region25: #{dkt_forward.1} parent=11 // pred_check
        %p313 = pneg %p198
      $region26: #{dkt_forward.1} parent=11 // pred_check_branch
        %315 = sbr.rel (%p313) target = $region28
      $region27: #{dkt_forward.1} parent=11 // pred_region
        _
      $region28: #{dkt_forward.1} parent=11 // pred_fallthru
        _
      // Predicated region
      $region29: #{dkt_forward.1} parent=11 // pred_check
        %p316 = pneg %p219
      $region30: #{dkt_forward.1} parent=11 // pred_check_branch
        %318 = sbr.rel (%p316) target = $region32
      $region31: #{dkt_forward.1} parent=11 // pred_region
        _
      $region32: #{dkt_forward.1} parent=11 // pred_fallthru
        _
      // Predicated region
      $region33: #{dkt_forward.1} parent=11 // pred_check
        %p319 = pneg %p240
      $region34: #{dkt_forward.1} parent=11 // pred_check_branch
        %321 = sbr.rel (%p319) target = $region36
      $region35: #{dkt_forward.1} parent=11 // pred_region
        _
      $region36: #{dkt_forward.1} parent=11 // pred_fallthru
        _
      // Predicated region
      $region37: #{dkt_forward.1} parent=11 // pred_check
        %p322 = pneg %p261
      $region38: #{dkt_forward.1} parent=11 // pred_check_branch
        %324 = sbr.rel (%p322) target = $region40
      $region39: #{dkt_forward.1} parent=11 // pred_region
        _
      $region40: #{dkt_forward.1} parent=11 // pred_fallthru
        _
    $region12: #{dkt_forward.1} parent=5 // pred_fallthru
      _
    %p325 = scmp.lt.s32.totalorder %s18, 2
    // Predicated region
    $region41: #{dkt_forward.1} parent=5 // pred_check
      %p326 = pneg %p325
    $region42: #{dkt_forward.1} parent=5 // pred_check_branch
      %328 = sbr.rel (%p326) target = $region44
    $region43: #{dkt_forward.1} parent=5 // pred_region
      // Predicated region
      $region45: #{dkt_forward.1} parent=43 // pred_check
        %p329 = pneg %p52
      $region46: #{dkt_forward.1} parent=43 // pred_check_branch
        %331 = sbr.rel (%p329) target = $region48
      $region47: #{dkt_forward.1} parent=43 // pred_region
        %s332 = smul.u32 2, %s26
        %p333 = scmp.lt.s32.totalorder %s25, 0
        %s334 = scalar_select %p333, %s25, 0
        %p335 = scmp.lt.s32.totalorder %s332, 3
        %s336 = scalar_select %p335, %s332, 3
        %s337 = smul.addr %s334, 4
        %s338 = sadd.s32 %s336, %s337
        %s339 = smul.addr %s338, 4
        %s340 = scalar_lea.vmem %s0, %s339
        %s341 = smul.u32 2, %s26
      $region48: #{dkt_forward.1} parent=43 // pred_fallthru
        _
      // Predicated region
      $region49: #{dkt_forward.1} parent=43 // pred_check
        %p342 = pneg %p80
      $region50: #{dkt_forward.1} parent=43 // pred_check_branch
        %344 = sbr.rel (%p342) target = $region52
      $region51: #{dkt_forward.1} parent=43 // pred_region
        %s345 = smul.u32 2, %s26
        %p346 = scmp.lt.s32.totalorder %s25, 0
        %s347 = scalar_select %p346, %s25, 0
        %p348 = scmp.lt.s32.totalorder %s345, 3
        %s349 = scalar_select %p348, %s345, 3
        %s350 = smul.addr %s347, 4
        %s351 = sadd.s32 %s349, %s350
        %s352 = smul.addr %s351, 4
        %s353 = scalar_lea.vmem %s1, %s352
        %s354 = smul.u32 2, %s26
      $region52: #{dkt_forward.1} parent=43 // pred_fallthru
        _
      // Predicated region
      $region53: #{dkt_forward.1} parent=43 // pred_check
        %p355 = pneg %p108
      $region54: #{dkt_forward.1} parent=43 // pred_check_branch
        %357 = sbr.rel (%p355) target = $region56
      $region55: #{dkt_forward.1} parent=43 // pred_region
        %s358 = smul.u32 2, %s26
        %p359 = scmp.lt.s32.totalorder %s25, 0
        %s360 = scalar_select %p359, %s25, 0
        %p361 = scmp.lt.s32.totalorder %s358, 3
        %s362 = scalar_select %p361, %s358, 3
        %s363 = smul.addr %s360, 4
        %s364 = sadd.s32 %s362, %s363
        %s365 = smul.addr %s364, 4
        %s366 = scalar_lea.vmem %s2, %s365
        %s367 = smul.u32 2, %s26
      $region56: #{dkt_forward.1} parent=43 // pred_fallthru
        _
    $region44: #{dkt_forward.1} parent=5 // pred_fallthru
      _
    %p368 = scmp.le.s32.totalorder 1, %s18
    %p369 = scmp.lt.s32.totalorder %s18, 3
    %p370 = pnand %p368, %p369
    %p371 = pneg %p370
    // Predicated region
    $region57: #{dkt_forward.1} parent=5 // pred_check
      _
    $region58: #{dkt_forward.1} parent=5 // pred_check_branch
      %373 = sbr.rel (%p370) target = $region60
    $region59: #{dkt_forward.1} parent=5 // pred_region
      %s374 = ssub.s32 %s18, 1
      %s375 = smul.u32 2, %s28
      %p376 = scmp.lt.s32.totalorder %s27, 0
      %s377 = scalar_select %p376, %s27, 0
      %p378 = scmp.lt.s32.totalorder %s375, 3
      %s379 = scalar_select %p378, %s375, 3
      %s380 = smul.addr %s377, 4
      %s381 = sadd.s32 %s379, %s380
      %s382 = smul.addr %s381, 4
      %s383 = scalar_lea.vmem %s0, %s382
      %p384 = pneg %p58
      %p385 = pneg %p55
      %s386 = smul.u32 2, %s28
      %p387 = scmp.lt.s32.totalorder %s27, 0
      %s388 = scalar_select %p387, %s27, 0
      %p389 = scmp.lt.s32.totalorder %s386, 3
      %s390 = scalar_select %p389, %s386, 3
      %s391 = smul.addr %s388, 4
      %s392 = sadd.s32 %s390, %s391
      %s393 = smul.addr %s392, 4
      %s394 = scalar_lea.vmem %s1, %s393
      %p395 = pneg %p86
      %p396 = pneg %p83
      %s397 = smul.u32 2, %s28
      %p398 = scmp.lt.s32.totalorder %s27, 0
      %s399 = scalar_select %p398, %s27, 0
      %p400 = scmp.lt.s32.totalorder %s397, 3
      %s401 = scalar_select %p400, %s397, 3
      %s402 = smul.addr %s399, 4
      %s403 = sadd.s32 %s401, %s402
      %s404 = smul.addr %s403, 4
      %s405 = scalar_lea.vmem %s2, %s404
      %p406 = pneg %p114
      %p407 = pneg %p111
      %p408 = pneg %p135
      %p409 = pneg %p132
      %p410 = pneg %p156
      %p411 = pneg %p153
      %p412 = pneg %p177
      %p413 = pneg %p174
      %p414 = pneg %p198
      %p415 = pneg %p195
      %p416 = pneg %p219
      %p417 = pneg %p216
      %p418 = pneg %p240
      %p419 = pneg %p237
      %p420 = pneg %p261
      %p421 = pneg %p258
      %p422 = pneg %p289
      %p423 = pneg %p286
      %p424 = scmp.lt.s32.totalorder %s27, 0
      %s425 = scalar_select %p424, %s27, 0
      %p426 = scmp.lt.s32.totalorder %s28, 1
      %s427 = scalar_select %p426, %s28, 1
      %s428 = smul.addr %s425, 2
      %s429 = sadd.s32 %s427, %s428
      %s430 = smul.addr %s429, 8
      %s431 = scalar_lea.vmem %s10, %s430
      %s432 = smul.u32 2, %s28
      %p433 = scmp.lt.s32.totalorder %s27, 0
      %s434 = scalar_select %p433, %s27, 0
      %p435 = scmp.lt.s32.totalorder %s432, 3
      %s436 = scalar_select %p435, %s432, 3
      %s437 = smul.addr %s434, 4
      %s438 = sadd.s32 %s436, %s437
      %s439 = smul.addr %s438, 4
      %s440 = scalar_lea.vmem %s0, %s439
      %s441 = smul.u32 2, %s28
      %s442 = smul.u32 2, %s28
      %p443 = scmp.lt.s32.totalorder %s27, 0
      %s444 = scalar_select %p443, %s27, 0
      %p445 = scmp.lt.s32.totalorder %s442, 3
      %s446 = scalar_select %p445, %s442, 3
      %s447 = smul.addr %s444, 4
      %s448 = sadd.s32 %s446, %s447
      %s449 = smul.addr %s448, 4
      %s450 = scalar_lea.vmem %s1, %s449
      %s451 = smul.u32 2, %s28
      %s452 = smul.u32 2, %s28
      %p453 = scmp.lt.s32.totalorder %s27, 0
      %s454 = scalar_select %p453, %s27, 0
      %p455 = scmp.lt.s32.totalorder %s452, 3
      %s456 = scalar_select %p455, %s452, 3
      %s457 = smul.addr %s454, 4
      %s458 = sadd.s32 %s456, %s457
      %s459 = smul.addr %s458, 4
      %s460 = scalar_lea.vmem %s2, %s459
      %s461 = smul.u32 2, %s28
      %p462 = scmp.lt.s32.totalorder %s27, 0
      %s463 = scalar_select %p462, %s27, 0
      %p464 = scmp.lt.s32.totalorder %s28, 1
      %s465 = scalar_select %p464, %s28, 1
      %s466 = smul.addr %s463, 2
      %s467 = sadd.s32 %s465, %s466
      %s468 = smul.addr %s467, 8
      %s469 = scalar_lea.vmem %s10, %s468
      %p471 = scmp.eq.s32.totalorder %s28, 0
      // Predicated region
      $region61: #{dkt_forward.1} parent=59 // pred_check
        %p472 = pneg %p471
      $region62: #{dkt_forward.1} parent=59 // pred_check_branch
        %474 = sbr.rel (%p472) target = $region64
      $region63: #{dkt_forward.1} parent=59 // pred_region
        %vm475 = vcmask 254976
        %476 = vst.msk [vmem:[#allocation4] sm:$0x3] %vm475, 0.0
        %477 = vst.msk [vmem:[#allocation5] sm:$0x3] %vm475, 0.0
      $region64: #{dkt_forward.1} parent=59 // pred_fallthru
        _
      %v478 = vld [vmem:[%s440] sm:$0xf]
      %v479 = vld [vmem:[%s440 + $0x4] sm:$0xf]
      %v480 = vld [vmem:[%s450] sm:$0xf]
      %v481 = vld [vmem:[%s450 + $0x4] sm:$0xf]
      %483 = vset.pattern.permute.xlu0 0
      %484 = vperm.xlu0 %483, %v480
      %v485 = vpop.permute.xlu0 %484
      %v488 = vunpack.c.l.s4 839922192
      %v489 = vunpack.c.0.s8 %v488
      %v490 = vperm.slane %v485, %v489
      %492 = vset.pattern.permute.xlu0 0
      %493 = vperm.xlu0 %492, %v481
      %v494 = vpop.permute.xlu0 %493
      %v497 = vunpack.c.l.s4 839922192
      %v498 = vunpack.c.0.s8 %v497
      %v499 = vperm.slane %v494, %v498
      %v500 = vunpack.c.l.bf16 %v478
      %v501 = vunpack.c.l.bf16 %v479
      %v502 = vunpack.c.l.bf16 %v490
      %v503 = vunpack.c.l.bf16 %v499
      %v504 = vmul.f32 %v500, %v502
      %v505 = vmul.f32 %v501, %v503
      %v506 = vpack.c.bf16 %v504, %v504
      %v507 = vpack.c.bf16 %v505, %v505
      %v508 = vunpack.c.l.bf16 %v506
      %v509 = vunpack.c.l.bf16 %v507
      %v510 = vsub.f32 %v500, %v508
      %v511 = vsub.f32 %v501, %v509
      %v512 = vpack.c.bf16 %v510, %v510
      %v513 = vpack.c.bf16 %v511, %v511
      %v516 = vunpack.c.l.b16 %v506
      %v517 = vunpack.c.l.b16 %v507
      %v518 = vpack.c.b16 %v517, %v516
      %v521 = vunpack.c.l.b16 %v512
      %v522 = vunpack.c.l.b16 %v513
      %v523 = vpack.c.b16 %v522, %v521
      %524 = vrot.lane.b32.xlu0 %v523, 32
      %v525 = vpop.permute.xlu0 %524
      %vm526 = vcmask 261120
      %v529 = vsel %vm526, %v518, %v525
      %v530 = vld [vmem:[%s3] sm:$0xf]
      %v531 = vld [vmem:[%s3 + $0x4] sm:$0xf]
      %v532 = vld [vmem:[%s3 + $0x8] sm:$0xf]
      %v533 = vld [vmem:[%s3 + $0xc] sm:$0xf]
      %v534 = vld [vmem:[%s3 + $0x10] sm:$0xf]
      %v535 = vld [vmem:[%s3 + $0x14] sm:$0xf]
      %v536 = vld [vmem:[%s3 + $0x18] sm:$0xf]
      %v537 = vld [vmem:[%s3 + $0x1c] sm:$0xf]
      %v538 = vld [vmem:[%s5] sm:$0x1]
      %v540 = vperm.slane %v538, 0
      %v550 = vunpack.c.l.b16 %v530
      %v551 = vunpack.c.l.b16 %v531
      %v552 = vunpack.c.l.b16 %v532
      %v553 = vunpack.c.l.b16 %v533
      %v554 = vunpack.c.l.b16 %v534
      %v555 = vunpack.c.l.b16 %v535
      %v556 = vunpack.c.l.b16 %v536
      %v557 = vunpack.c.l.b16 %v537
      %v558 = vpack.c.b16 %v551, %v550
      %v559 = vpack.c.b16 %v553, %v552
      %v560 = vpack.c.b16 %v555, %v554
      %v561 = vpack.c.b16 %v557, %v556
      %vm566 = vcmask 523264
      %v567 = vsel %vm566, %v529, 0
      %569 = vmatpush.bf16.msra.mxu0 0
      %570 = vmatpush.bf16.msra.mxu0 0
      %571 = vmatpush.bf16.msra.mxu0 0
      %572 = vmatpush.bf16.msra.mxu0 0
      %573 = vmatpush.bf16.msra.mxu0 %v561
      %574 = vmatpush.bf16.msra.mxu0 %v560
      %575 = vmatpush.bf16.msra.mxu0 %v559
      %576 = vmatpush.bf16.msra.mxu0 %v558
      %577 = vmatmul.bf16.gmra.mxu0 %v567
      %v578 = vpop.f32.mrf.mxu0
      %v579 = vadd.f32 %v540, %v578
      %v580 = vpop.f32.mrf.mxu0
      %v581 = vadd.f32 %v540, %v580
      %582 = vdwg.mxu0
      %v585 = vrot.slane %v579, 2
      %v586 = vrot.slane %v579, 4
      %v587 = vrot.slane %v579, 6
      %v588 = vrot.slane %v581, 2
      %v589 = vrot.slane %v581, 4
      %v590 = vrot.slane %v581, 6
      %v597 = vpack.c.bf16 %v579, %v579
      %v598 = vpack.c.bf16 %v585, %v585
      %v599 = vpack.c.bf16 %v586, %v586
      %v600 = vpack.c.bf16 %v587, %v587
      %v601 = vpack.c.bf16 %v581, %v581
      %v602 = vpack.c.bf16 %v588, %v588
      %v603 = vpack.c.bf16 %v589, %v589
      %v604 = vpack.c.bf16 %v590, %v590
      %605 = vst [vmem:[#allocation2] sm:$0x1] %v597
      %606 = vst [vmem:[#allocation2 + $0x1] sm:$0x1] %v598
      %607 = vst [vmem:[#allocation2 + $0x2] sm:$0x1] %v599
      %608 = vst [vmem:[#allocation2 + $0x3] sm:$0x1] %v600
      %609 = vst [vmem:[#allocation2 + $0x4] sm:$0x1] %v601
      %610 = vst [vmem:[#allocation2 + $0x5] sm:$0x1] %v602
      %611 = vst [vmem:[#allocation2 + $0x6] sm:$0x1] %v603
      %612 = vst [vmem:[#allocation2 + $0x7] sm:$0x1] %v604
      %v613 = vld [vmem:[%s4] sm:$0xf]
      %v614 = vld [vmem:[%s4 + $0x4] sm:$0xf]
      %v615 = vld [vmem:[%s4 + $0x8] sm:$0xf]
      %v616 = vld [vmem:[%s4 + $0xc] sm:$0xf]
      %v617 = vld [vmem:[#allocation4] sm:$0x3]
      %v618 = vld [vmem:[#allocation5] sm:$0x3]
      %v619 = vld [vmem:[#allocation2] sm:$0x1]
      %v620 = vunpack.c.l.bf16 %v619
      %v621 = vpack.c.bf16 %v617, %v617
      %v626 = vunpack.c.l.b16 %v613
      %v627 = vunpack.c.l.b16 %v614
      %v628 = vunpack.c.l.b16 %v615
      %v629 = vunpack.c.l.b16 %v616
      %v630 = vpack.c.b16 %v627, %v626
      %v631 = vpack.c.b16 %v629, %v628
      %v635 = vsel %vm526, %v621, 0
      %637 = vmatpush.bf16.msra.mxu0 0
      %638 = vmatpush.bf16.msra.mxu0 0
      %639 = vmatpush.bf16.msra.mxu0 0
      %640 = vmatpush.bf16.msra.mxu0 0
      %641 = vmatpush.bf16.msra.mxu0 0
      %642 = vmatpush.bf16.msra.mxu0 0
      %643 = vmatpush.bf16.msra.mxu0 %v631
      %644 = vmatpush.bf16.msra.mxu0 %v630
      %645 = vmatmul.bf16.gmra.mxu0 %v635
      %v646 = vpop.f32.mrf.mxu0
      %v647 = vadd.f32 0.0, %v646
      %v648 = vpop.f32.mrf.mxu0
      %649 = vdwg.mxu0
      %v650 = vadd.f32 %v620, %v647
      %v651 = vxor.u32 %v650, 2147483648
      %v652 = vmul.f32 %v651, 1.442695
      %v653 = vpow.pop %v652
      %v654 = vadd.f32 %v653, 1.0
      %v655 = vrcp.pop %v654
      %v656 = vmul.f32 %v654, %v655
      %v657 = vsub.f32 1.0, %v656
      %v658 = vmul.f32 %v655, %v657
      %v659 = vadd.f32 %v655, %v658
      %vm660 = vweird.f32 %v654
      %vm661 = vweird.f32 %v655
      %vm662 = vmor %vm660, %vm661
      %v663 = vsel %vm662, %v655, %v659
      %v664 = vand.u32 2147483647, %v654
      %vm665 = vcmp.eq.f32.partialorder %v664, 8.507059e+37
      %v666 = vand.u32 %v654, 2147483648
      %v667 = vor.u32 1.1754944e-38, %v666
      %v668 = vsel %vm665, %v667, %v663
      %v669 = vmul.f32 1.0, %v668
      %v670 = vtanh.pop %v650
      %672 = vrot.lane.b32.xlu0 %v618, 32
      %v673 = vpop.permute.xlu0 %672
      %v675 = vmul.f32 %v669, %v673
      %677 = vrot.lane.b32.xlu0 %v670, 64
      %v678 = vpop.permute.xlu0 %677
      %v680 = vmul.f32 %v669, %v678
      %682 = vrot.lane.b32.xlu0 %v680, 32
      %v683 = vpop.permute.xlu0 %682
      %v685 = vadd.f32 %v675, %v683
      %v686 = vtanh.pop %v685
      %688 = vrot.lane.b32.xlu0 %v686, 64
      %v689 = vpop.permute.xlu0 %688
      %v691 = vmul.f32 %v669, %v689
      %v692 = vpack.c.bf16 %v691, %v691
      %v694 = vrot.slane %v692, 3
      %vm695 = vcmask 1040384
      %v698 = vsel %vm695, %v692, %v694
      %700 = vrot.lane.b32.xlu0 %v698, 32
      %v701 = vpop.permute.xlu0 %700
      %vm703 = vcmask 253952
      %704 = vst.msk [vmem:[#allocation3] sm:$0x1] %vm703, %v701
      %s705 = scalar_lea.vmem [#allocation2], 1
      %v706 = vld [vmem:[%s705] sm:$0x1]
      %v707 = vunpack.c.l.bf16 %v706
      %v708 = vunpack.c.l.b16 %v692
      %v709 = vpack.c.b16 %v708, %v708
      %710 = vrot.lane.b32.xlu0 %v709, 32
      %v711 = vpop.permute.xlu0 %710
      %v713 = vsel %vm526, %v711, 0
      %715 = vmatpush.bf16.msra.mxu0 0
      %716 = vmatpush.bf16.msra.mxu0 0
      %717 = vmatpush.bf16.msra.mxu0 0
      %718 = vmatpush.bf16.msra.mxu0 0
      %719 = vmatpush.bf16.msra.mxu0 0
      %720 = vmatpush.bf16.msra.mxu0 0
      %721 = vmatpush.bf16.msra.mxu0 %v631
      %722 = vmatpush.bf16.msra.mxu0 %v630
      %723 = vmatmul.bf16.gmra.mxu0 %v713
      %v724 = vpop.f32.mrf.mxu0
      %v725 = vadd.f32 0.0, %v724
      %v726 = vpop.f32.mrf.mxu0
      %727 = vdwg.mxu0
      %v728 = vadd.f32 %v707, %v725
      %v729 = vxor.u32 %v728, 2147483648
      %v730 = vmul.f32 %v729, 1.442695
      %v731 = vpow.pop %v730
      %v732 = vadd.f32 %v731, 1.0
      %v733 = vrcp.pop %v732
      %v734 = vmul.f32 %v732, %v733
      %v735 = vsub.f32 1.0, %v734
      %v736 = vmul.f32 %v733, %v735
      %v737 = vadd.f32 %v733, %v736
      %vm738 = vweird.f32 %v732
      %vm739 = vweird.f32 %v733
      %vm740 = vmor %vm738, %vm739
      %v741 = vsel %vm740, %v733, %v737
      %v742 = vand.u32 2147483647, %v732
      %vm743 = vcmp.eq.f32.partialorder %v742, 8.507059e+37
      %v744 = vand.u32 %v732, 2147483648
      %v745 = vor.u32 1.1754944e-38, %v744
      %v746 = vsel %vm743, %v745, %v741
      %v747 = vmul.f32 1.0, %v746
      %v748 = vtanh.pop %v728
      %v749 = vmul.f32 %v747, %v685
      %751 = vrot.lane.b32.xlu0 %v748, 64
      %v752 = vpop.permute.xlu0 %751
      %v754 = vmul.f32 %v747, %v752
      %756 = vrot.lane.b32.xlu0 %v754, 32
      %v757 = vpop.permute.xlu0 %756
      %v759 = vadd.f32 %v749, %v757
      %v760 = vtanh.pop %v759
      %762 = vrot.lane.b32.xlu0 %v760, 64
      %v763 = vpop.permute.xlu0 %762
      %v765 = vmul.f32 %v747, %v763
      %v766 = vpack.c.bf16 %v765, %v765
      %v768 = vrot.slane %v766, 3
      %v771 = vsel %vm695, %v766, %v768
      %773 = vrot.lane.b32.xlu0 %v771, 32
      %v774 = vpop.permute.xlu0 %773
      %s776 = scalar_lea.vmem [#allocation3], 1
      %777 = vst.msk [vmem:[%s776] sm:$0x1] %vm703, %v774
      %s778 = scalar_lea.vmem [#allocation2], 2
      %v779 = vld [vmem:[%s778] sm:$0x1]
      %v780 = vunpack.c.l.bf16 %v779
      %v781 = vunpack.c.l.b16 %v766
      %v782 = vpack.c.b16 %v781, %v781
      %783 = vrot.lane.b32.xlu0 %v782, 32
      %v784 = vpop.permute.xlu0 %783
      %v786 = vsel %vm526, %v784, 0
      %788 = vmatpush.bf16.msra.mxu0 0
      %789 = vmatpush.bf16.msra.mxu0 0
      %790 = vmatpush.bf16.msra.mxu0 0
      %791 = vmatpush.bf16.msra.mxu0 0
      %792 = vmatpush.bf16.msra.mxu0 0
      %793 = vmatpush.bf16.msra.mxu0 0
      %794 = vmatpush.bf16.msra.mxu0 %v631
      %795 = vmatpush.bf16.msra.mxu0 %v630
      %796 = vmatmul.bf16.gmra.mxu0 %v786
      %v797 = vpop.f32.mrf.mxu0
      %v798 = vadd.f32 0.0, %v797
      %v799 = vpop.f32.mrf.mxu0
      %800 = vdwg.mxu0
      %v801 = vadd.f32 %v780, %v798
      %v802 = vxor.u32 %v801, 2147483648
      %v803 = vmul.f32 %v802, 1.442695
      %v804 = vpow.pop %v803
      %v805 = vadd.f32 %v804, 1.0
      %v806 = vrcp.pop %v805
      %v807 = vmul.f32 %v805, %v806
      %v808 = vsub.f32 1.0, %v807
      %v809 = vmul.f32 %v806, %v808
      %v810 = vadd.f32 %v806, %v809
      %vm811 = vweird.f32 %v805
      %vm812 = vweird.f32 %v806
      %vm813 = vmor %vm811, %vm812
      %v814 = vsel %vm813, %v806, %v810
      %v815 = vand.u32 2147483647, %v805
      %vm816 = vcmp.eq.f32.partialorder %v815, 8.507059e+37
      %v817 = vand.u32 %v805, 2147483648
      %v818 = vor.u32 1.1754944e-38, %v817
      %v819 = vsel %vm816, %v818, %v814
      %v820 = vmul.f32 1.0, %v819
      %v821 = vtanh.pop %v801
      %v822 = vmul.f32 %v820, %v759
      %824 = vrot.lane.b32.xlu0 %v821, 64
      %v825 = vpop.permute.xlu0 %824
      %v827 = vmul.f32 %v820, %v825
      %829 = vrot.lane.b32.xlu0 %v827, 32
      %v830 = vpop.permute.xlu0 %829
      %v832 = vadd.f32 %v822, %v830
      %v833 = vtanh.pop %v832
      %835 = vrot.lane.b32.xlu0 %v833, 64
      %v836 = vpop.permute.xlu0 %835
      %v838 = vmul.f32 %v820, %v836
      %v839 = vpack.c.bf16 %v838, %v838
      %v841 = vrot.slane %v839, 3
      %v844 = vsel %vm695, %v839, %v841
      %846 = vrot.lane.b32.xlu0 %v844, 32
      %v847 = vpop.permute.xlu0 %846
      %s849 = scalar_lea.vmem [#allocation3], 2
      %850 = vst.msk [vmem:[%s849] sm:$0x1] %vm703, %v847
      %s851 = scalar_lea.vmem [#allocation2], 3
      %v852 = vld [vmem:[%s851] sm:$0x1]
      %v853 = vunpack.c.l.bf16 %v852
      %v854 = vunpack.c.l.b16 %v839
      %v855 = vpack.c.b16 %v854, %v854
      %856 = vrot.lane.b32.xlu0 %v855, 32
      %v857 = vpop.permute.xlu0 %856
      %v859 = vsel %vm526, %v857, 0
      %861 = vmatpush.bf16.msra.mxu0 0
      %862 = vmatpush.bf16.msra.mxu0 0
      %863 = vmatpush.bf16.msra.mxu0 0
      %864 = vmatpush.bf16.msra.mxu0 0
      %865 = vmatpush.bf16.msra.mxu0 0
      %866 = vmatpush.bf16.msra.mxu0 0
      %867 = vmatpush.bf16.msra.mxu0 %v631
      %868 = vmatpush.bf16.msra.mxu0 %v630
      %869 = vmatmul.bf16.gmra.mxu0 %v859
      %v870 = vpop.f32.mrf.mxu0
      %v871 = vadd.f32 0.0, %v870
      %v872 = vpop.f32.mrf.mxu0
      %873 = vdwg.mxu0
      %v874 = vadd.f32 %v853, %v871
      %v875 = vxor.u32 %v874, 2147483648
      %v876 = vmul.f32 %v875, 1.442695
      %v877 = vpow.pop %v876
      %v878 = vadd.f32 %v877, 1.0
      %v879 = vrcp.pop %v878
      %v880 = vmul.f32 %v878, %v879
      %v881 = vsub.f32 1.0, %v880
      %v882 = vmul.f32 %v879, %v881
      %v883 = vadd.f32 %v879, %v882
      %vm884 = vweird.f32 %v878
      %vm885 = vweird.f32 %v879
      %vm886 = vmor %vm884, %vm885
      %v887 = vsel %vm886, %v879, %v883
      %v888 = vand.u32 2147483647, %v878
      %vm889 = vcmp.eq.f32.partialorder %v888, 8.507059e+37
      %v890 = vand.u32 %v878, 2147483648
      %v891 = vor.u32 1.1754944e-38, %v890
      %v892 = vsel %vm889, %v891, %v887
      %v893 = vmul.f32 1.0, %v892
      %v894 = vtanh.pop %v874
      %v895 = vmul.f32 %v893, %v832
      %897 = vrot.lane.b32.xlu0 %v894, 64
      %v898 = vpop.permute.xlu0 %897
      %v900 = vmul.f32 %v893, %v898
      %902 = vrot.lane.b32.xlu0 %v900, 32
      %v903 = vpop.permute.xlu0 %902
      %v905 = vadd.f32 %v895, %v903
      %v906 = vtanh.pop %v905
      %908 = vrot.lane.b32.xlu0 %v906, 64
      %v909 = vpop.permute.xlu0 %908
      %v911 = vmul.f32 %v893, %v909
      %v912 = vpack.c.bf16 %v911, %v911
      %v914 = vrot.slane %v912, 3
      %v917 = vsel %vm695, %v912, %v914
      %919 = vrot.lane.b32.xlu0 %v917, 32
      %v920 = vpop.permute.xlu0 %919
      %s922 = scalar_lea.vmem [#allocation3], 3
      %923 = vst.msk [vmem:[%s922] sm:$0x1] %vm703, %v920
      %s924 = scalar_lea.vmem [#allocation2], 4
      %v925 = vld [vmem:[%s924] sm:$0x1]
      %v926 = vunpack.c.l.bf16 %v925
      %v927 = vunpack.c.l.b16 %v912
      %v928 = vpack.c.b16 %v927, %v927
      %929 = vrot.lane.b32.xlu0 %v928, 32
      %v930 = vpop.permute.xlu0 %929
      %v932 = vsel %vm526, %v930, 0
      %934 = vmatpush.bf16.msra.mxu0 0
      %935 = vmatpush.bf16.msra.mxu0 0
      %936 = vmatpush.bf16.msra.mxu0 0
      %937 = vmatpush.bf16.msra.mxu0 0
      %938 = vmatpush.bf16.msra.mxu0 0
      %939 = vmatpush.bf16.msra.mxu0 0
      %940 = vmatpush.bf16.msra.mxu0 %v631
      %941 = vmatpush.bf16.msra.mxu0 %v630
      %942 = vmatmul.bf16.gmra.mxu0 %v932
      %v943 = vpop.f32.mrf.mxu0
      %v944 = vadd.f32 0.0, %v943
      %v945 = vpop.f32.mrf.mxu0
      %946 = vdwg.mxu0
      %v947 = vadd.f32 %v926, %v944
      %v948 = vxor.u32 %v947, 2147483648
      %v949 = vmul.f32 %v948, 1.442695
      %v950 = vpow.pop %v949
      %v951 = vadd.f32 %v950, 1.0
      %v952 = vrcp.pop %v951
      %v953 = vmul.f32 %v951, %v952
      %v954 = vsub.f32 1.0, %v953
      %v955 = vmul.f32 %v952, %v954
      %v956 = vadd.f32 %v952, %v955
      %vm957 = vweird.f32 %v951
      %vm958 = vweird.f32 %v952
      %vm959 = vmor %vm957, %vm958
      %v960 = vsel %vm959, %v952, %v956
      %v961 = vand.u32 2147483647, %v951
      %vm962 = vcmp.eq.f32.partialorder %v961, 8.507059e+37
      %v963 = vand.u32 %v951, 2147483648
      %v964 = vor.u32 1.1754944e-38, %v963
      %v965 = vsel %vm962, %v964, %v960
      %v966 = vmul.f32 1.0, %v965
      %v967 = vtanh.pop %v947
      %v968 = vmul.f32 %v966, %v905
      %970 = vrot.lane.b32.xlu0 %v967, 64
      %v971 = vpop.permute.xlu0 %970
      %v973 = vmul.f32 %v966, %v971
      %975 = vrot.lane.b32.xlu0 %v973, 32
      %v976 = vpop.permute.xlu0 %975
      %v978 = vadd.f32 %v968, %v976
      %v979 = vtanh.pop %v978
      %981 = vrot.lane.b32.xlu0 %v979, 64
      %v982 = vpop.permute.xlu0 %981
      %v984 = vmul.f32 %v966, %v982
      %v985 = vpack.c.bf16 %v984, %v984
      %v987 = vrot.slane %v985, 3
      %v990 = vsel %vm695, %v985, %v987
      %992 = vrot.lane.b32.xlu0 %v990, 32
      %v993 = vpop.permute.xlu0 %992
      %s995 = scalar_lea.vmem [#allocation3], 4
      %996 = vst.msk [vmem:[%s995] sm:$0x1] %vm703, %v993
      %s997 = scalar_lea.vmem [#allocation2], 5
      %v998 = vld [vmem:[%s997] sm:$0x1]
      %v999 = vunpack.c.l.bf16 %v998
      %v1000 = vunpack.c.l.b16 %v985
      %v1001 = vpack.c.b16 %v1000, %v1000
      %1002 = vrot.lane.b32.xlu0 %v1001, 32
      %v1003 = vpop.permute.xlu0 %1002
      %v1005 = vsel %vm526, %v1003, 0
      %1007 = vmatpush.bf16.msra.mxu0 0
      %1008 = vmatpush.bf16.msra.mxu0 0
      %1009 = vmatpush.bf16.msra.mxu0 0
      %1010 = vmatpush.bf16.msra.mxu0 0
      %1011 = vmatpush.bf16.msra.mxu0 0
      %1012 = vmatpush.bf16.msra.mxu0 0
      %1013 = vmatpush.bf16.msra.mxu0 %v631
      %1014 = vmatpush.bf16.msra.mxu0 %v630
      %1015 = vmatmul.bf16.gmra.mxu0 %v1005
      %v1016 = vpop.f32.mrf.mxu0
      %v1017 = vadd.f32 0.0, %v1016
      %v1018 = vpop.f32.mrf.mxu0
      %1019 = vdwg.mxu0
      %v1020 = vadd.f32 %v999, %v1017
      %v1021 = vxor.u32 %v1020, 2147483648
      %v1022 = vmul.f32 %v1021, 1.442695
      %v1023 = vpow.pop %v1022
      %v1024 = vadd.f32 %v1023, 1.0
      %v1025 = vrcp.pop %v1024
      %v1026 = vmul.f32 %v1024, %v1025
      %v1027 = vsub.f32 1.0, %v1026
      %v1028 = vmul.f32 %v1025, %v1027
      %v1029 = vadd.f32 %v1025, %v1028
      %vm1030 = vweird.f32 %v1024
      %vm1031 = vweird.f32 %v1025
      %vm1032 = vmor %vm1030, %vm1031
      %v1033 = vsel %vm1032, %v1025, %v1029
      %v1034 = vand.u32 2147483647, %v1024
      %vm1035 = vcmp.eq.f32.partialorder %v1034, 8.507059e+37
      %v1036 = vand.u32 %v1024, 2147483648
      %v1037 = vor.u32 1.1754944e-38, %v1036
      %v1038 = vsel %vm1035, %v1037, %v1033
      %v1039 = vmul.f32 1.0, %v1038
      %v1040 = vtanh.pop %v1020
      %v1041 = vmul.f32 %v1039, %v978
      %1043 = vrot.lane.b32.xlu0 %v1040, 64
      %v1044 = vpop.permute.xlu0 %1043
      %v1046 = vmul.f32 %v1039, %v1044
      %1048 = vrot.lane.b32.xlu0 %v1046, 32
      %v1049 = vpop.permute.xlu0 %1048
      %v1051 = vadd.f32 %v1041, %v1049
      %v1052 = vtanh.pop %v1051
      %1054 = vrot.lane.b32.xlu0 %v1052, 64
      %v1055 = vpop.permute.xlu0 %1054
      %v1057 = vmul.f32 %v1039, %v1055
      %v1058 = vpack.c.bf16 %v1057, %v1057
      %v1060 = vrot.slane %v1058, 3
      %v1063 = vsel %vm695, %v1058, %v1060
      %1065 = vrot.lane.b32.xlu0 %v1063, 32
      %v1066 = vpop.permute.xlu0 %1065
      %s1068 = scalar_lea.vmem [#allocation3], 5
      %1069 = vst.msk [vmem:[%s1068] sm:$0x1] %vm703, %v1066
      %s1070 = scalar_lea.vmem [#allocation2], 6
      %v1071 = vld [vmem:[%s1070] sm:$0x1]
      %v1072 = vunpack.c.l.bf16 %v1071
      %v1073 = vunpack.c.l.b16 %v1058
      %v1074 = vpack.c.b16 %v1073, %v1073
      %1075 = vrot.lane.b32.xlu0 %v1074, 32
      %v1076 = vpop.permute.xlu0 %1075
      %v1078 = vsel %vm526, %v1076, 0
      %1080 = vmatpush.bf16.msra.mxu0 0
      %1081 = vmatpush.bf16.msra.mxu0 0
      %1082 = vmatpush.bf16.msra.mxu0 0
      %1083 = vmatpush.bf16.msra.mxu0 0
      %1084 = vmatpush.bf16.msra.mxu0 0
      %1085 = vmatpush.bf16.msra.mxu0 0
      %1086 = vmatpush.bf16.msra.mxu0 %v631
      %1087 = vmatpush.bf16.msra.mxu0 %v630
      %1088 = vmatmul.bf16.gmra.mxu0 %v1078
      %v1089 = vpop.f32.mrf.mxu0
      %v1090 = vadd.f32 0.0, %v1089
      %v1091 = vpop.f32.mrf.mxu0
      %1092 = vdwg.mxu0
      %v1093 = vadd.f32 %v1072, %v1090
      %v1094 = vxor.u32 %v1093, 2147483648
      %v1095 = vmul.f32 %v1094, 1.442695
      %v1096 = vpow.pop %v1095
      %v1097 = vadd.f32 %v1096, 1.0
      %v1098 = vrcp.pop %v1097
      %v1099 = vmul.f32 %v1097, %v1098
      %v1100 = vsub.f32 1.0, %v1099
      %v1101 = vmul.f32 %v1098, %v1100
      %v1102 = vadd.f32 %v1098, %v1101
      %vm1103 = vweird.f32 %v1097
      %vm1104 = vweird.f32 %v1098
      %vm1105 = vmor %vm1103, %vm1104
      %v1106 = vsel %vm1105, %v1098, %v1102
      %v1107 = vand.u32 2147483647, %v1097
      %vm1108 = vcmp.eq.f32.partialorder %v1107, 8.507059e+37
      %v1109 = vand.u32 %v1097, 2147483648
      %v1110 = vor.u32 1.1754944e-38, %v1109
      %v1111 = vsel %vm1108, %v1110, %v1106
      %v1112 = vmul.f32 1.0, %v1111
      %v1113 = vtanh.pop %v1093
      %v1114 = vmul.f32 %v1112, %v1051
      %1116 = vrot.lane.b32.xlu0 %v1113, 64
      %v1117 = vpop.permute.xlu0 %1116
      %v1119 = vmul.f32 %v1112, %v1117
      %1121 = vrot.lane.b32.xlu0 %v1119, 32
      %v1122 = vpop.permute.xlu0 %1121
      %v1124 = vadd.f32 %v1114, %v1122
      %v1125 = vtanh.pop %v1124
      %1127 = vrot.lane.b32.xlu0 %v1125, 64
      %v1128 = vpop.permute.xlu0 %1127
      %v1130 = vmul.f32 %v1112, %v1128
      %v1131 = vpack.c.bf16 %v1130, %v1130
      %v1133 = vrot.slane %v1131, 3
      %v1136 = vsel %vm695, %v1131, %v1133
      %1138 = vrot.lane.b32.xlu0 %v1136, 32
      %v1139 = vpop.permute.xlu0 %1138
      %s1141 = scalar_lea.vmem [#allocation3], 6
      %1142 = vst.msk [vmem:[%s1141] sm:$0x1] %vm703, %v1139
      %s1143 = scalar_lea.vmem [#allocation2], 7
      %v1144 = vld [vmem:[%s1143] sm:$0x1]
      %v1145 = vunpack.c.l.bf16 %v1144
      %v1146 = vunpack.c.l.b16 %v1131
      %v1147 = vpack.c.b16 %v1146, %v1146
      %1148 = vrot.lane.b32.xlu0 %v1147, 32
      %v1149 = vpop.permute.xlu0 %1148
      %v1151 = vsel %vm526, %v1149, 0
      %1153 = vmatpush.bf16.msra.mxu0 0
      %1154 = vmatpush.bf16.msra.mxu0 0
      %1155 = vmatpush.bf16.msra.mxu0 0
      %1156 = vmatpush.bf16.msra.mxu0 0
      %1157 = vmatpush.bf16.msra.mxu0 0
      %1158 = vmatpush.bf16.msra.mxu0 0
      %1159 = vmatpush.bf16.msra.mxu0 %v631
      %1160 = vmatpush.bf16.msra.mxu0 %v630
      %1161 = vmatmul.bf16.gmra.mxu0 %v1151
      %v1162 = vpop.f32.mrf.mxu0
      %v1163 = vadd.f32 0.0, %v1162
      %v1164 = vpop.f32.mrf.mxu0
      %1165 = vdwg.mxu0
      %v1166 = vadd.f32 %v1145, %v1163
      %v1167 = vxor.u32 %v1166, 2147483648
      %v1168 = vmul.f32 %v1167, 1.442695
      %v1169 = vpow.pop %v1168
      %v1170 = vadd.f32 %v1169, 1.0
      %v1171 = vrcp.pop %v1170
      %v1172 = vmul.f32 %v1170, %v1171
      %v1173 = vsub.f32 1.0, %v1172
      %v1174 = vmul.f32 %v1171, %v1173
      %v1175 = vadd.f32 %v1171, %v1174
      %vm1176 = vweird.f32 %v1170
      %vm1177 = vweird.f32 %v1171
      %vm1178 = vmor %vm1176, %vm1177
      %v1179 = vsel %vm1178, %v1171, %v1175
      %v1180 = vand.u32 2147483647, %v1170
      %vm1181 = vcmp.eq.f32.partialorder %v1180, 8.507059e+37
      %v1182 = vand.u32 %v1170, 2147483648
      %v1183 = vor.u32 1.1754944e-38, %v1182
      %v1184 = vsel %vm1181, %v1183, %v1179
      %v1185 = vmul.f32 1.0, %v1184
      %v1186 = vtanh.pop %v1166
      %v1187 = vmul.f32 %v1185, %v1124
      %1189 = vrot.lane.b32.xlu0 %v1186, 64
      %v1190 = vpop.permute.xlu0 %1189
      %v1192 = vmul.f32 %v1185, %v1190
      %1194 = vrot.lane.b32.xlu0 %v1192, 32
      %v1195 = vpop.permute.xlu0 %1194
      %v1197 = vadd.f32 %v1187, %v1195
      %v1198 = vtanh.pop %v1197
      %1200 = vrot.lane.b32.xlu0 %v1198, 64
      %v1201 = vpop.permute.xlu0 %1200
      %v1203 = vmul.f32 %v1185, %v1201
      %v1204 = vpack.c.bf16 %v1203, %v1203
      %v1206 = vrot.slane %v1204, 3
      %v1209 = vsel %vm695, %v1204, %v1206
      %1211 = vrot.lane.b32.xlu0 %v1209, 32
      %v1212 = vpop.permute.xlu0 %1211
      %s1214 = scalar_lea.vmem [#allocation3], 7
      %1215 = vst.msk [vmem:[%s1214] sm:$0x1] %vm703, %v1212
      %1217 = vst [vmem:[#allocation1] ss:$4 sm:$0xff] %v1203
      %v1218 = vld.sshfl [vmem:[#allocation1] sm:$0xff pattern:$0x73625140]
      %1219 = vrot.lane.b32.xlu0 %v1218, 32
      %v1220 = vpop.permute.xlu0 %1219
      %vm1222 = vcmask 254976
      %1223 = vst.msk [vmem:[#allocation4] sm:$0x3] %vm1222, %v1220
      %1225 = vst [vmem:[#allocation1] ss:$4 sm:$0xff] %v1197
      %v1226 = vld.sshfl [vmem:[#allocation1] sm:$0xff pattern:$0x73625140]
      %1227 = vrot.lane.b32.xlu0 %v1226, 96
      %v1228 = vpop.permute.xlu0 %1227
      %1230 = vst.msk [vmem:[#allocation5] sm:$0x3] %vm1222, %v1228
      %v1231 = vld [vmem:[#allocation3] sm:$0x1]
      %v1232 = vld [vmem:[#allocation3 + $0x1] sm:$0x1]
      %v1233 = vld [vmem:[#allocation3 + $0x2] sm:$0x1]
      %v1234 = vld [vmem:[#allocation3 + $0x3] sm:$0x1]
      %v1235 = vld [vmem:[#allocation3 + $0x4] sm:$0x1]
      %v1236 = vld [vmem:[#allocation3 + $0x5] sm:$0x1]
      %v1237 = vld [vmem:[#allocation3 + $0x6] sm:$0x1]
      %v1238 = vld [vmem:[#allocation3 + $0x7] sm:$0x1]
      %v1239 = vld [vmem:[%s460] sm:$0xf]
      %v1240 = vld [vmem:[%s460 + $0x4] sm:$0xf]
      %1242 = vst [vmem:[#allocation1] ss:$9 sm:$0xff] %v1231
      %s1244 = scalar_lea.vmem [#allocation1], 1
      %1245 = vst [vmem:[%s1244] ss:$9 sm:$0xff] %v1232
      %s1247 = scalar_lea.vmem [#allocation1], 2
      %1248 = vst [vmem:[%s1247] ss:$9 sm:$0xff] %v1233
      %s1250 = scalar_lea.vmem [#allocation1], 3
      %1251 = vst [vmem:[%s1250] ss:$9 sm:$0xff] %v1234
      %s1253 = scalar_lea.vmem [#allocation1], 4
      %1254 = vst [vmem:[%s1253] ss:$9 sm:$0xff] %v1235
      %s1256 = scalar_lea.vmem [#allocation1], 5
      %1257 = vst [vmem:[%s1256] ss:$9 sm:$0xff] %v1236
      %s1259 = scalar_lea.vmem [#allocation1], 6
      %1260 = vst [vmem:[%s1259] ss:$9 sm:$0xff] %v1237
      %s1262 = scalar_lea.vmem [#allocation1], 7
      %1263 = vst [vmem:[%s1262] ss:$9 sm:$0xff] %v1238
      %v1264 = vld [vmem:[#allocation1] sm:$0xff]
      %v1267 = vunpack.c.l.b16 %v1239
      %v1268 = vunpack.c.l.b16 %v1240
      %v1269 = vpack.c.b16 %v1268, %v1267
      %1270 = vrot.lane.b32.xlu0 %v1269, 32
      %v1271 = vpop.permute.xlu0 %1270
      %v1273 = vsel %vm526, %v1264, %v1271
      %v1274 = vld [vmem:[%s6] sm:$0xf]
      %v1275 = vld [vmem:[%s6 + $0x4] sm:$0xf]
      %v1276 = vld [vmem:[%s6 + $0x8] sm:$0xf]
      %v1277 = vld [vmem:[%s6 + $0xc] sm:$0xf]
      %v1278 = vld [vmem:[%s6 + $0x10] sm:$0xf]
      %v1279 = vld [vmem:[%s6 + $0x14] sm:$0xf]
      %v1280 = vld [vmem:[%s6 + $0x18] sm:$0xf]
      %v1281 = vld [vmem:[%s6 + $0x1c] sm:$0xf]
      %v1282 = vld [vmem:[%s7] sm:$0x1]
      %v1284 = vperm.slane %v1282, 0
      %v1294 = vunpack.c.l.b16 %v1274
      %v1295 = vunpack.c.l.b16 %v1275
      %v1296 = vunpack.c.l.b16 %v1276
      %v1297 = vunpack.c.l.b16 %v1277
      %v1298 = vunpack.c.l.b16 %v1278
      %v1299 = vunpack.c.l.b16 %v1279
      %v1300 = vunpack.c.l.b16 %v1280
      %v1301 = vunpack.c.l.b16 %v1281
      %v1302 = vpack.c.b16 %v1295, %v1294
      %v1303 = vpack.c.b16 %v1297, %v1296
      %v1304 = vpack.c.b16 %v1299, %v1298
      %v1305 = vpack.c.b16 %v1301, %v1300
      %v1310 = vsel %vm566, %v1273, 0
      %1312 = vmatpush.bf16.msra.mxu0 0
      %1313 = vmatpush.bf16.msra.mxu0 0
      %1314 = vmatpush.bf16.msra.mxu0 0
      %1315 = vmatpush.bf16.msra.mxu0 0
      %1316 = vmatpush.bf16.msra.mxu0 %v1305
      %1317 = vmatpush.bf16.msra.mxu0 %v1304
      %1318 = vmatpush.bf16.msra.mxu0 %v1303
      %1319 = vmatpush.bf16.msra.mxu0 %v1302
      %1320 = vmatmul.bf16.gmra.mxu0 %v1310
      %v1321 = vpop.f32.mrf.mxu0
      %v1322 = vadd.f32 %v1284, %v1321
      %v1323 = vpop.f32.mrf.mxu0
      %v1324 = vadd.f32 %v1284, %v1323
      %1325 = vdwg.mxu0
      %v1326 = vmax.f32 %v1322, 0.0
      %v1327 = vmax.f32 %v1324, 0.0
      %v1328 = vld [vmem:[%s8] sm:$0x1]
      %v1330 = vperm.slane %v1328, 0
      %v1332 = vmul.f32 %v1326, %v1330
      %v1333 = vmul.f32 %v1327, %v1330
      %v1336 = vrot.slane %v1332, 2
      %v1337 = vrot.slane %v1332, 4
      %v1338 = vrot.slane %v1332, 6
      %v1339 = vrot.slane %v1333, 2
      %v1340 = vrot.slane %v1333, 4
      %v1341 = vrot.slane %v1333, 6
      %v1348 = vsel %vm1222, %v1332, 0.0
      %1349 = vadd.xlane.f32.xlu0 %v1348
      %v1350 = vpop.xlane.xlu0 %1349
      %v1351 = vsel %vm1222, %v1336, 0.0
      %1352 = vadd.xlane.f32.xlu0 %v1351
      %v1353 = vpop.xlane.xlu0 %1352
      %v1354 = vsel %vm1222, %v1337, 0.0
      %1355 = vadd.xlane.f32.xlu0 %v1354
      %v1356 = vpop.xlane.xlu0 %1355
      %v1357 = vsel %vm1222, %v1338, 0.0
      %1358 = vadd.xlane.f32.xlu0 %v1357
      %v1359 = vpop.xlane.xlu0 %1358
      %v1360 = vsel %vm1222, %v1333, 0.0
      %1361 = vadd.xlane.f32.xlu0 %v1360
      %v1362 = vpop.xlane.xlu0 %1361
      %v1363 = vsel %vm1222, %v1339, 0.0
      %1364 = vadd.xlane.f32.xlu0 %v1363
      %v1365 = vpop.xlane.xlu0 %1364
      %v1366 = vsel %vm1222, %v1340, 0.0
      %1367 = vadd.xlane.f32.xlu0 %v1366
      %v1368 = vpop.xlane.xlu0 %1367
      %v1369 = vsel %vm1222, %v1341, 0.0
      %1370 = vadd.xlane.f32.xlu0 %v1369
      %v1371 = vpop.xlane.xlu0 %1370
      %v1372 = vld [vmem:[#allocation6] sm:$0x1]
      %v1374 = vperm.slane %v1372, 0
      %1375 = vset.pattern.permute.xlu0 0
      %1376 = vperm.xlu0 %1375, %v1374
      %v1377 = vpop.permute.xlu0 %1376
      %v1379 = vadd.f32 %v1350, %v1377
      %v1380 = vadd.f32 %v1353, %v1377
      %v1381 = vadd.f32 %v1356, %v1377
      %v1382 = vadd.f32 %v1359, %v1377
      %v1383 = vadd.f32 %v1362, %v1377
      %v1384 = vadd.f32 %v1365, %v1377
      %v1385 = vadd.f32 %v1368, %v1377
      %v1386 = vadd.f32 %v1371, %v1377
      %v1387 = vxor.u32 %v1379, 2147483648
      %v1388 = vxor.u32 %v1380, 2147483648
      %v1389 = vxor.u32 %v1381, 2147483648
      %v1390 = vxor.u32 %v1382, 2147483648
      %v1391 = vxor.u32 %v1383, 2147483648
      %v1392 = vxor.u32 %v1384, 2147483648
      %v1393 = vxor.u32 %v1385, 2147483648
      %v1394 = vxor.u32 %v1386, 2147483648
      %v1395 = vmul.f32 %v1387, 1.442695
      %v1396 = vpow.pop %v1395
      %v1397 = vmul.f32 %v1388, 1.442695
      %v1398 = vpow.pop %v1397
      %v1399 = vmul.f32 %v1389, 1.442695
      %v1400 = vpow.pop %v1399
      %v1401 = vmul.f32 %v1390, 1.442695
      %v1402 = vpow.pop %v1401
      %v1403 = vmul.f32 %v1391, 1.442695
      %v1404 = vpow.pop %v1403
      %v1405 = vmul.f32 %v1392, 1.442695
      %v1406 = vpow.pop %v1405
      %v1407 = vmul.f32 %v1393, 1.442695
      %v1408 = vpow.pop %v1407
      %v1409 = vmul.f32 %v1394, 1.442695
      %v1410 = vpow.pop %v1409
      %v1411 = vadd.f32 %v1396, 1.0
      %v1412 = vadd.f32 %v1398, 1.0
      %v1413 = vadd.f32 %v1400, 1.0
      %v1414 = vadd.f32 %v1402, 1.0
      %v1415 = vadd.f32 %v1404, 1.0
      %v1416 = vadd.f32 %v1406, 1.0
      %v1417 = vadd.f32 %v1408, 1.0
      %v1418 = vadd.f32 %v1410, 1.0
      %v1419 = vrcp.pop %v1411
      %v1420 = vmul.f32 %v1411, %v1419
      %v1421 = vsub.f32 1.0, %v1420
      %v1422 = vmul.f32 %v1419, %v1421
      %v1423 = vadd.f32 %v1419, %v1422
      %vm1424 = vweird.f32 %v1411
      %vm1425 = vweird.f32 %v1419
      %vm1426 = vmor %vm1424, %vm1425
      %v1427 = vsel %vm1426, %v1419, %v1423
      %v1428 = vand.u32 2147483647, %v1411
      %vm1429 = vcmp.eq.f32.partialorder %v1428, 8.507059e+37
      %v1430 = vand.u32 %v1411, 2147483648
      %v1431 = vor.u32 1.1754944e-38, %v1430
      %v1432 = vsel %vm1429, %v1431, %v1427
      %v1433 = vmul.f32 1.0, %v1432
      %v1434 = vrcp.pop %v1412
      %v1435 = vmul.f32 %v1412, %v1434
      %v1436 = vsub.f32 1.0, %v1435
      %v1437 = vmul.f32 %v1434, %v1436
      %v1438 = vadd.f32 %v1434, %v1437
      %vm1439 = vweird.f32 %v1412
      %vm1440 = vweird.f32 %v1434
      %vm1441 = vmor %vm1439, %vm1440
      %v1442 = vsel %vm1441, %v1434, %v1438
      %v1443 = vand.u32 2147483647, %v1412
      %vm1444 = vcmp.eq.f32.partialorder %v1443, 8.507059e+37
      %v1445 = vand.u32 %v1412, 2147483648
      %v1446 = vor.u32 1.1754944e-38, %v1445
      %v1447 = vsel %vm1444, %v1446, %v1442
      %v1448 = vmul.f32 1.0, %v1447
      %v1449 = vrcp.pop %v1413
      %v1450 = vmul.f32 %v1413, %v1449
      %v1451 = vsub.f32 1.0, %v1450
      %v1452 = vmul.f32 %v1449, %v1451
      %v1453 = vadd.f32 %v1449, %v1452
      %vm1454 = vweird.f32 %v1413
      %vm1455 = vweird.f32 %v1449
      %vm1456 = vmor %vm1454, %vm1455
      %v1457 = vsel %vm1456, %v1449, %v1453
      %v1458 = vand.u32 2147483647, %v1413
      %vm1459 = vcmp.eq.f32.partialorder %v1458, 8.507059e+37
      %v1460 = vand.u32 %v1413, 2147483648
      %v1461 = vor.u32 1.1754944e-38, %v1460
      %v1462 = vsel %vm1459, %v1461, %v1457
      %v1463 = vmul.f32 1.0, %v1462
      %v1464 = vrcp.pop %v1414
      %v1465 = vmul.f32 %v1414, %v1464
      %v1466 = vsub.f32 1.0, %v1465
      %v1467 = vmul.f32 %v1464, %v1466
      %v1468 = vadd.f32 %v1464, %v1467
      %vm1469 = vweird.f32 %v1414
      %vm1470 = vweird.f32 %v1464
      %vm1471 = vmor %vm1469, %vm1470
      %v1472 = vsel %vm1471, %v1464, %v1468
      %v1473 = vand.u32 2147483647, %v1414
      %vm1474 = vcmp.eq.f32.partialorder %v1473, 8.507059e+37
      %v1475 = vand.u32 %v1414, 2147483648
      %v1476 = vor.u32 1.1754944e-38, %v1475
      %v1477 = vsel %vm1474, %v1476, %v1472
      %v1478 = vmul.f32 1.0, %v1477
      %v1479 = vrcp.pop %v1415
      %v1480 = vmul.f32 %v1415, %v1479
      %v1481 = vsub.f32 1.0, %v1480
      %v1482 = vmul.f32 %v1479, %v1481
      %v1483 = vadd.f32 %v1479, %v1482
      %vm1484 = vweird.f32 %v1415
      %vm1485 = vweird.f32 %v1479
      %vm1486 = vmor %vm1484, %vm1485
      %v1487 = vsel %vm1486, %v1479, %v1483
      %v1488 = vand.u32 2147483647, %v1415
      %vm1489 = vcmp.eq.f32.partialorder %v1488, 8.507059e+37
      %v1490 = vand.u32 %v1415, 2147483648
      %v1491 = vor.u32 1.1754944e-38, %v1490
      %v1492 = vsel %vm1489, %v1491, %v1487
      %v1493 = vmul.f32 1.0, %v1492
      %v1494 = vrcp.pop %v1416
      %v1495 = vmul.f32 %v1416, %v1494
      %v1496 = vsub.f32 1.0, %v1495
      %v1497 = vmul.f32 %v1494, %v1496
      %v1498 = vadd.f32 %v1494, %v1497
      %vm1499 = vweird.f32 %v1416
      %vm1500 = vweird.f32 %v1494
      %vm1501 = vmor %vm1499, %vm1500
      %v1502 = vsel %vm1501, %v1494, %v1498
      %v1503 = vand.u32 2147483647, %v1416
      %vm1504 = vcmp.eq.f32.partialorder %v1503, 8.507059e+37
      %v1505 = vand.u32 %v1416, 2147483648
      %v1506 = vor.u32 1.1754944e-38, %v1505
      %v1507 = vsel %vm1504, %v1506, %v1502
      %v1508 = vmul.f32 1.0, %v1507
      %v1509 = vrcp.pop %v1417
      %v1510 = vmul.f32 %v1417, %v1509
      %v1511 = vsub.f32 1.0, %v1510
      %v1512 = vmul.f32 %v1509, %v1511
      %v1513 = vadd.f32 %v1509, %v1512
      %vm1514 = vweird.f32 %v1417
      %vm1515 = vweird.f32 %v1509
      %vm1516 = vmor %vm1514, %vm1515
      %v1517 = vsel %vm1516, %v1509, %v1513
      %v1518 = vand.u32 2147483647, %v1417
      %vm1519 = vcmp.eq.f32.partialorder %v1518, 8.507059e+37
      %v1520 = vand.u32 %v1417, 2147483648
      %v1521 = vor.u32 1.1754944e-38, %v1520
      %v1522 = vsel %vm1519, %v1521, %v1517
      %v1523 = vmul.f32 1.0, %v1522
      %v1524 = vrcp.pop %v1418
      %v1525 = vmul.f32 %v1418, %v1524
      %v1526 = vsub.f32 1.0, %v1525
      %v1527 = vmul.f32 %v1524, %v1526
      %v1528 = vadd.f32 %v1524, %v1527
      %vm1529 = vweird.f32 %v1418
      %vm1530 = vweird.f32 %v1524
      %vm1531 = vmor %vm1529, %vm1530
      %v1532 = vsel %vm1531, %v1524, %v1528
      %v1533 = vand.u32 2147483647, %v1418
      %vm1534 = vcmp.eq.f32.partialorder %v1533, 8.507059e+37
      %v1535 = vand.u32 %v1418, 2147483648
      %v1536 = vor.u32 1.1754944e-38, %v1535
      %v1537 = vsel %vm1534, %v1536, %v1532
      %v1538 = vmul.f32 1.0, %v1537
      %v1547 = vlaneseq
      %v1548 = vand.u32 %v1547, 127
      %v1549 = vperm.slane %v1433, %v1548
      %v1550 = vperm.slane %v1448, %v1548
      %v1551 = vperm.slane %v1463, %v1548
      %v1552 = vperm.slane %v1478, %v1548
      %v1553 = vperm.slane %v1493, %v1548
      %v1554 = vperm.slane %v1508, %v1548
      %v1555 = vperm.slane %v1523, %v1548
      %v1556 = vperm.slane %v1538, %v1548
      %vm1557 = vcmask 1041409
      %v1558 = vsel %vm1557, %v1550, %v1549
      %vm1559 = vcmask 1042434
      %v1560 = vsel %vm1559, %v1551, %v1558
      %vm1561 = vcmask 1043459
      %v1562 = vsel %vm1561, %v1552, %v1560
      %vm1563 = vcmask 1044484
      %v1564 = vsel %vm1563, %v1553, %v1562
      %vm1565 = vcmask 1045509
      %v1566 = vsel %vm1565, %v1554, %v1564
      %vm1567 = vcmask 1046534
      %v1568 = vsel %vm1567, %v1555, %v1566
      %vm1569 = vcmask 1047559
      %v1570 = vsel %vm1569, %v1556, %v1568
      %vm1572 = vcmask 15360
      %1573 = vst.msk [vmem:[%s469] sm:$0xff] %vm1572, %v1570
      %p1574 = scmp.lt.s32.totalorder %s27, 0
      %s1575 = scalar_select %p1574, %s27, 0
      %p1576 = scmp.lt.s32.totalorder %s28, 1
      %s1577 = scalar_select %p1576, %s28, 1
      %s1578 = smul.addr %s1575, 2
      %s1579 = sadd.s32 %s1577, %s1578
      %s1580 = smul.addr %s1579, 8
      %s1581 = scalar_lea.vmem %s10, %s1580
      // Predicated region
      $region65: #{dkt_forward.1} parent=59 // pred_check
        %p1582 = pneg %p286
      $region66: #{dkt_forward.1} parent=59 // pred_check_branch
        %1584 = sbr.rel (%p1582) target = $region68
      $region67: #{dkt_forward.1} parent=59 // pred_region
        _
      $region68: #{dkt_forward.1} parent=59 // pred_fallthru
        _
    $region60: #{dkt_forward.1} parent=5 // pred_fallthru
      _
    %p1585 = scmp.le.s32.totalorder 2, %s18
    // Predicated region
    $region69: #{dkt_forward.1} parent=5 // pred_check
      %p1586 = pneg %p1585
    $region70: #{dkt_forward.1} parent=5 // pred_check_branch
      %1588 = sbr.rel (%p1586) target = $region72
    $region71: #{dkt_forward.1} parent=5 // pred_region
      %s1589 = ssub.s32 %s18, 2
      // Predicated region
      $region73: #{dkt_forward.1} parent=71 // pred_check
        %p1590 = pneg %p292
      $region74: #{dkt_forward.1} parent=71 // pred_check_branch
        %1592 = sbr.rel (%p1590) target = $region76
      $region75: #{dkt_forward.1} parent=71 // pred_region
        %p1593 = scmp.lt.s32.totalorder %s29, 0
        %s1594 = scalar_select %p1593, %s29, 0
        %p1595 = scmp.lt.s32.totalorder %s30, 1
        %s1596 = scalar_select %p1595, %s30, 1
        %s1597 = smul.addr %s1594, 2
        %s1598 = sadd.s32 %s1596, %s1597
        %s1599 = smul.addr %s1598, 8
        %s1600 = scalar_lea.vmem %s10, %s1599
      $region76: #{dkt_forward.1} parent=71 // pred_fallthru
        _
    $region72: #{dkt_forward.1} parent=5 // pred_fallthru
      _
  $region6: #{dkt_forward.1} parent=0 // loop_footer
    %s22 = sadd.s32 1, %s18
  $region7: #{dkt_forward.1} parent=0 // loop_footer_branch
    %17 = sbr.rel target = $region3
  $region8: #{dkt_forward.1} parent=0 // loop_exit
    _

</llo_original>
